<compile_context>
chip_gen: v7x
topology: tpu7x:2x2x1
jax: 0.10.0
libtpu: 0.0.40
codegen_flags: <defaults>
</compile_context>

<pallas_src>
import functools

import jax
import jax.numpy as jnp
from jax.experimental import pallas as pl
from jax.experimental.pallas import tpu as pltpu


def _conv_lrelu_kernel(x_ref, w_ref, b_ref, m_ref, o_ref, *,
                       H, W, Cin, Cout, KH, KW, pad, Nb, neg_slope):
    """One grid step: Nb images -> conv3x3 + bias + leaky_relu.

    x_ref: (Nb, Cin, H*W)        channels on sublanes, spatial on lanes
    w_ref: (Cout, KH*KW*Cin)     column order (kh, kw, ci)
    b_ref: (Cout, 1)
    m_ref: (KH*KW, Nb*H*W)       per-tap {0,1} zero-padding masks (x dtype)
    o_ref: (Nb, Cout, H*W)       lane-dense output block
    """
    HW = H * W
    L = Nb * HW

    # Pack the Nb images of this block along the lane axis: (Cin, Nb*HW).
    xb = x_ref[...]
    if Nb == 1:
        x = xb[0]
    else:
        x = jnp.concatenate([xb[n] for n in range(Nb)], axis=1)

    # Hoisted out of the tap loop: weights (one read + cast), masks, bias.
    w = w_ref[...].astype(jnp.float32)            # (Cout, KH*KW*Cin)
    masks = m_ref[...]                            # (KH*KW, L)
    acc = jnp.broadcast_to(b_ref[...].astype(jnp.float32), (Cout, L))

    for kh in range(KH):
        for kw in range(KW):
            t = kh * KW + kw
            dh = kh - pad
            dw = kw - pad
            # xs[p] = x[p + dh*W + dw]  (cyclic lane rotate, XLU slot).
            shift = (-(dh * W + dw)) % L
            xs = pltpu.roll(x, shift, axis=1) if shift != 0 else x
            # Zero taps whose source pixel falls outside the image; this also
            # kills pixels that the roll dragged across row / image boundaries.
            xs = (xs * masks[t:t + 1, :]).astype(jnp.float32)
            # Contract over Cin on the MXU: (Cout, Cin) @ (Cin, L) -> (Cout, L).
            w_tap = w[:, t * Cin:(t + 1) * Cin]
            acc = acc + jnp.dot(w_tap, xs, preferred_element_type=jnp.float32)

    out = jnp.where(acc >= 0, acc, neg_slope * acc).astype(o_ref.dtype)
    # Unpack the lane-packed result back into the (Nb, Cout, HW) block.
    for n in range(Nb):
        o_ref[n] = out[:, n * HW:(n + 1) * HW]


def _num_parallel_steps():
    """Best-effort TensorCore count of the local chip (grid sharding target)."""
    try:
        kind = jax.devices()[0].device_kind.lower()
    except Exception:
        return 1
    # 2 TensorCores per Pallas device: v4 / v5p megacore and v7x.
    if any(tag in kind for tag in ("v4", "v5p", "v5 p", "7x", "v7")):
        return 2
    return 1


def _vmem_capacity_bytes():
    try:
        return int(pltpu.get_tpu_info().vmem_capacity_bytes)
    except Exception:
        return 64 * 1024 * 1024  # v7x floor; v5e/v6e have 128 MiB.


def conv_bn_leaky_relu_2d(x_nchw, weight, bias, *, padding=1, neg_slope=0.2):
    """x_nchw: (N, Cin, H, W); weight: (Cout, Cin, KH, KW); bias: (Cout,)."""
    N, Cin, H, W = x_nchw.shape
    Cout, Cin_w, KH, KW = weight.shape
    assert Cin == Cin_w, "groups != 1 not supported"
    HW = H * W
    dtype = x_nchw.dtype
    itemsize = jnp.dtype(dtype).itemsize

    # --- choose how many images each grid step packs on the lane axis -------
    cores = _num_parallel_steps()
    num_steps = cores if (N % cores == 0 and N >= cores) else N
    Nb = N // num_steps
    # Keep the (double-buffered) x/out blocks plus masks well inside VMEM; the
    # capacity is queried per generation (64 MiB v7x vs 128 MiB v5e/v6e).
    vmem_cap = _vmem_capacity_bytes()
    step_bytes = (2 * Nb * (Cin + Cout) * HW + KH * KW * Nb * HW) * itemsize
    if step_bytes > vmem_cap // 4:
        num_steps, Nb = N, 1
    L = Nb * HW

    # --- wrapper-side constants (free reshapes / tiny precomputes) ----------
    x_flat = x_nchw.reshape(N, Cin, HW)                       # pure reshape
    # (Cout, KH*KW*Cin), column order (kh, kw, ci) matching the kernel's taps.
    w_mat = jnp.transpose(weight, (0, 2, 3, 1)).reshape(Cout, KH * KW * Cin)
    b_col = bias.reshape(Cout, 1)

    # Per-tap zero-padding masks, tiled across the Nb lane-packed images.
    pos = jnp.arange(HW, dtype=jnp.int32)
    hh, ww = pos // W, pos % W
    rows = []
    for kh in range(KH):
        for kw in range(KW):
            dh, dw = kh - padding, kw - padding
            valid = ((hh + dh >= 0) & (hh + dh < H) &
                     (ww + dw >= 0) & (ww + dw < W))
            rows.append(valid)
    masks = jnp.tile(jnp.stack(rows).astype(dtype), (1, Nb))  # (KH*KW, L)

    kernel = functools.partial(
        _conv_lrelu_kernel, H=H, W=W, Cin=Cin, Cout=Cout, KH=KH, KW=KW,
        pad=padding, Nb=Nb, neg_slope=neg_slope)

    # Grid over batch blocks; each step reads a (Nb, Cin, HW) slab and writes a
    # lane-dense (Nb, Cout, HW) slab.  BlockSpec double-buffers the DMAs.
    # NOTE: for very large H*W additionally tile rows with a 1-row halo, sizing
    # the tile against the queried VMEM capacity above.
    out_flat = pl.pallas_call(
        kernel,
        out_shape=jax.ShapeDtypeStruct((N, Cout, HW), dtype),
        grid=(num_steps,),
        in_specs=[
            pl.BlockSpec((Nb, Cin, HW), lambda s: (s, 0, 0)),
            pl.BlockSpec((Cout, KH * KW * Cin), lambda s: (0, 0)),
            pl.BlockSpec((Cout, 1), lambda s: (0, 0)),
            pl.BlockSpec((KH * KW, L), lambda s: (0, 0)),
        ],
        out_specs=pl.BlockSpec((Nb, Cout, HW), lambda s: (s, 0, 0)),
        compiler_params=pltpu.CompilerParams(
            dimension_semantics=("parallel",),
            vmem_limit_bytes=min(vmem_cap // 2, 64 * 1024 * 1024)),
    )(x_flat, w_mat, b_col, masks)

    # Pure reshape back to (N, Cout, H, W) — already channel-major (NCHW).
    return out_flat.reshape(N, Cout, H, W)


def _reference(x_nchw, weight, bias, *, padding=1, neg_slope=0.2):
    y = jax.lax.conv_general_dilated(
        x_nchw.astype(jnp.float32), weight.astype(jnp.float32),
        window_strides=(1, 1), padding=[(padding, padding), (padding, padding)],
        dimension_numbers=("NCHW", "OIHW", "NCHW"))
    y = y + bias.reshape(1, -1, 1, 1)
    return jnp.where(y >= 0, y, neg_slope * y).astype(x_nchw.dtype)


if __name__ == "__main__":
    # Deterministic synthetic parameters (shapes of nn.Conv2d(4, 8, 3, padding=1)).
    key = jax.random.PRNGKey(0)
    kx, kw, kb = jax.random.split(key, 3)

    N, Cin, H, W = 2, 4, 16, 16
    Cout, KH, KW = 8, 3, 3

    x = jax.random.normal(kx, (N, Cin, H, W), dtype=jnp.float32)
    fan_in = Cin * KH * KW
    bound = 1.0 / (fan_in ** 0.5)
    weight = jax.random.uniform(kw, (Cout, Cin, KH, KW), jnp.float32, -bound, bound)
    bias = jax.random.uniform(kb, (Cout,), jnp.float32, -bound, bound)

    out = conv_bn_leaky_relu_2d(x, weight, bias)
    out = jax.block_until_ready(out)

    ref = _reference(x, weight, bias)
    assert out.shape == (N, Cout, H, W)
    assert jnp.allclose(out, ref, atol=1e-4, rtol=1e-4), "mismatch vs reference conv"

    # TODO(synk): self.bn (BatchNorm2d) is unused in the module's forward(), so it
    # is intentionally not implemented.
    print("KERNEL_OK")
</pallas_src>

<mosaic_0001>
module attributes {stable_mosaic.version = 11 : i64} {
  func.func @_conv_lrelu_kernel(%arg0: i32, %arg1: memref<2x4x256xf32, #tpu.memory_space<vmem>>, %arg2: memref<8x36xf32, #tpu.memory_space<vmem>>, %arg3: memref<8x1xf32, #tpu.memory_space<vmem>>, %arg4: memref<9x512xf32, #tpu.memory_space<vmem>>, %arg5: memref<2x8x256xf32, #tpu.memory_space<vmem>>) attributes {dimension_semantics = [#tpu.dimension_semantics<parallel>], iteration_bounds = array<i64: 1>, scalar_prefetch = 0 : i64, scratch_operands = 0 : i64, tpu.core_type = #tpu.core_type<tc>, window_params = [{transform_indices = @transform_0, window_bounds = array<i64: 2, 4, 256>}, {pipeline_mode = #tpu.pipeline_mode<synchronous>, transform_indices = @transform_1, window_bounds = array<i64: 8, 36>}, {pipeline_mode = #tpu.pipeline_mode<synchronous>, transform_indices = @transform_2, window_bounds = array<i64: 8, 1>}, {pipeline_mode = #tpu.pipeline_mode<synchronous>, transform_indices = @transform_3, window_bounds = array<i64: 9, 512>}, {transform_indices = @transform_4, window_bounds = array<i64: 2, 8, 256>}]} {
    %c0 = arith.constant 0 : index
    %c0_0 = arith.constant 0 : index
    %c0_1 = arith.constant 0 : index
    %0 = vector.load %arg1[%c0, %c0_0, %c0_1] : memref<2x4x256xf32, #tpu.memory_space<vmem>>, vector<2x4x256xf32>
    %1 = vector.extract_strided_slice %0 {offsets = [0, 0, 0], sizes = [1, 4, 256], strides = [1, 1, 1]} : vector<2x4x256xf32> to vector<1x4x256xf32>
    %2 = vector.shape_cast %1 : vector<1x4x256xf32> to vector<4x256xf32>
    %3 = vector.extract_strided_slice %0 {offsets = [1, 0, 0], sizes = [1, 4, 256], strides = [1, 1, 1]} : vector<2x4x256xf32> to vector<1x4x256xf32>
    %4 = vector.shape_cast %3 : vector<1x4x256xf32> to vector<4x256xf32>
    %5 = tpu.concatenate %2, %4 in 1 : vector<4x256xf32>, vector<4x256xf32> -> vector<4x512xf32>
    %c0_2 = arith.constant 0 : index
    %c0_3 = arith.constant 0 : index
    %6 = vector.load %arg2[%c0_2, %c0_3] : memref<8x36xf32, #tpu.memory_space<vmem>>, vector<8x36xf32>
    %c0_4 = arith.constant 0 : index
    %c0_5 = arith.constant 0 : index
    %7 = vector.load %arg4[%c0_4, %c0_5] : memref<9x512xf32, #tpu.memory_space<vmem>>, vector<9x512xf32>
    %c0_6 = arith.constant 0 : index
    %c0_7 = arith.constant 0 : index
    %8 = vector.load %arg3[%c0_6, %c0_7] : memref<8x1xf32, #tpu.memory_space<vmem>>, vector<8x1xf32>
    %9 = vector.shape_cast %8 : vector<8x1xf32> to vector<8x1xf32>
    %10 = vector.broadcast %9 : vector<8x1xf32> to vector<8x512xf32>
    %c17_i32 = arith.constant 17 : i32
    %11 = tpu.dynamic_rotate %5 by %c17_i32 dim 1 : vector<4x512xf32>, i32 -> vector<4x512xf32>
    %12 = vector.extract_strided_slice %7 {offsets = [0, 0], sizes = [1, 512], strides = [1, 1]} : vector<9x512xf32> to vector<1x512xf32>
    %13 = vector.broadcast %12 : vector<1x512xf32> to vector<4x512xf32>
    %14 = arith.mulf %11, %13 : vector<4x512xf32>
    %15 = vector.extract_strided_slice %6 {offsets = [0, 0], sizes = [8, 4], strides = [1, 1]} : vector<8x36xf32> to vector<8x4xf32>
    %cst = arith.constant dense<0.000000e+00> : vector<8x512xf32>
    %16 = tpu.matmul %15, %14, %cst {dimension_numbers = #tpu.dot_dimension_numbers<[1], [0], [0], [1], [0, 0, 1, 1], [], []>} : vector<8x4xf32>, vector<4x512xf32>, vector<8x512xf32> -> vector<8x512xf32>
    %17 = arith.addf %10, %16 : vector<8x512xf32>
    %c16_i32 = arith.constant 16 : i32
    %18 = tpu.dynamic_rotate %5 by %c16_i32 dim 1 : vector<4x512xf32>, i32 -> vector<4x512xf32>
    %19 = vector.extract_strided_slice %7 {offsets = [1, 0], sizes = [1, 512], strides = [1, 1]} : vector<9x512xf32> to vector<1x512xf32>
    %20 = vector.broadcast %19 : vector<1x512xf32> to vector<4x512xf32>
    %21 = arith.mulf %18, %20 : vector<4x512xf32>
    %22 = vector.extract_strided_slice %6 {offsets = [0, 4], sizes = [8, 4], strides = [1, 1]} : vector<8x36xf32> to vector<8x4xf32>
    %cst_8 = arith.constant dense<0.000000e+00> : vector<8x512xf32>
    %23 = tpu.matmul %22, %21, %cst_8 {dimension_numbers = #tpu.dot_dimension_numbers<[1], [0], [0], [1], [0, 0, 1, 1], [], []>} : vector<8x4xf32>, vector<4x512xf32>, vector<8x512xf32> -> vector<8x512xf32>
    %24 = arith.addf %17, %23 : vector<8x512xf32>
    %c15_i32 = arith.constant 15 : i32
    %25 = tpu.dynamic_rotate %5 by %c15_i32 dim 1 : vector<4x512xf32>, i32 -> vector<4x512xf32>
    %26 = vector.extract_strided_slice %7 {offsets = [2, 0], sizes = [1, 512], strides = [1, 1]} : vector<9x512xf32> to vector<1x512xf32>
    %27 = vector.broadcast %26 : vector<1x512xf32> to vector<4x512xf32>
    %28 = arith.mulf %25, %27 : vector<4x512xf32>
    %29 = vector.extract_strided_slice %6 {offsets = [0, 8], sizes = [8, 4], strides = [1, 1]} : vector<8x36xf32> to vector<8x4xf32>
    %cst_9 = arith.constant dense<0.000000e+00> : vector<8x512xf32>
    %30 = tpu.matmul %29, %28, %cst_9 {dimension_numbers = #tpu.dot_dimension_numbers<[1], [0], [0], [1], [0, 0, 1, 1], [], []>} : vector<8x4xf32>, vector<4x512xf32>, vector<8x512xf32> -> vector<8x512xf32>
    %31 = arith.addf %24, %30 : vector<8x512xf32>
    %c1_i32 = arith.constant 1 : i32
    %32 = tpu.dynamic_rotate %5 by %c1_i32 dim 1 : vector<4x512xf32>, i32 -> vector<4x512xf32>
    %33 = vector.extract_strided_slice %7 {offsets = [3, 0], sizes = [1, 512], strides = [1, 1]} : vector<9x512xf32> to vector<1x512xf32>
    %34 = vector.broadcast %33 : vector<1x512xf32> to vector<4x512xf32>
    %35 = arith.mulf %32, %34 : vector<4x512xf32>
    %36 = vector.extract_strided_slice %6 {offsets = [0, 12], sizes = [8, 4], strides = [1, 1]} : vector<8x36xf32> to vector<8x4xf32>
    %cst_10 = arith.constant dense<0.000000e+00> : vector<8x512xf32>
    %37 = tpu.matmul %36, %35, %cst_10 {dimension_numbers = #tpu.dot_dimension_numbers<[1], [0], [0], [1], [0, 0, 1, 1], [], []>} : vector<8x4xf32>, vector<4x512xf32>, vector<8x512xf32> -> vector<8x512xf32>
    %38 = arith.addf %31, %37 : vector<8x512xf32>
    %39 = vector.extract_strided_slice %7 {offsets = [4, 0], sizes = [1, 512], strides = [1, 1]} : vector<9x512xf32> to vector<1x512xf32>
    %40 = vector.broadcast %39 : vector<1x512xf32> to vector<4x512xf32>
    %41 = arith.mulf %5, %40 : vector<4x512xf32>
    %42 = vector.extract_strided_slice %6 {offsets = [0, 16], sizes = [8, 4], strides = [1, 1]} : vector<8x36xf32> to vector<8x4xf32>
    %cst_11 = arith.constant dense<0.000000e+00> : vector<8x512xf32>
    %43 = tpu.matmul %42, %41, %cst_11 {dimension_numbers = #tpu.dot_dimension_numbers<[1], [0], [0], [1], [0, 0, 1, 1], [], []>} : vector<8x4xf32>, vector<4x512xf32>, vector<8x512xf32> -> vector<8x512xf32>
    %44 = arith.addf %38, %43 : vector<8x512xf32>
    %c511_i32 = arith.constant 511 : i32
    %45 = tpu.dynamic_rotate %5 by %c511_i32 dim 1 : vector<4x512xf32>, i32 -> vector<4x512xf32>
    %46 = vector.extract_strided_slice %7 {offsets = [5, 0], sizes = [1, 512], strides = [1, 1]} : vector<9x512xf32> to vector<1x512xf32>
    %47 = vector.broadcast %46 : vector<1x512xf32> to vector<4x512xf32>
    %48 = arith.mulf %45, %47 : vector<4x512xf32>
    %49 = vector.extract_strided_slice %6 {offsets = [0, 20], sizes = [8, 4], strides = [1, 1]} : vector<8x36xf32> to vector<8x4xf32>
    %cst_12 = arith.constant dense<0.000000e+00> : vector<8x512xf32>
    %50 = tpu.matmul %49, %48, %cst_12 {dimension_numbers = #tpu.dot_dimension_numbers<[1], [0], [0], [1], [0, 0, 1, 1], [], []>} : vector<8x4xf32>, vector<4x512xf32>, vector<8x512xf32> -> vector<8x512xf32>
    %51 = arith.addf %44, %50 : vector<8x512xf32>
    %c497_i32 = arith.constant 497 : i32
    %52 = tpu.dynamic_rotate %5 by %c497_i32 dim 1 : vector<4x512xf32>, i32 -> vector<4x512xf32>
    %53 = vector.extract_strided_slice %7 {offsets = [6, 0], sizes = [1, 512], strides = [1, 1]} : vector<9x512xf32> to vector<1x512xf32>
    %54 = vector.broadcast %53 : vector<1x512xf32> to vector<4x512xf32>
    %55 = arith.mulf %52, %54 : vector<4x512xf32>
    %56 = vector.extract_strided_slice %6 {offsets = [0, 24], sizes = [8, 4], strides = [1, 1]} : vector<8x36xf32> to vector<8x4xf32>
    %cst_13 = arith.constant dense<0.000000e+00> : vector<8x512xf32>
    %57 = tpu.matmul %56, %55, %cst_13 {dimension_numbers = #tpu.dot_dimension_numbers<[1], [0], [0], [1], [0, 0, 1, 1], [], []>} : vector<8x4xf32>, vector<4x512xf32>, vector<8x512xf32> -> vector<8x512xf32>
    %58 = arith.addf %51, %57 : vector<8x512xf32>
    %c496_i32 = arith.constant 496 : i32
    %59 = tpu.dynamic_rotate %5 by %c496_i32 dim 1 : vector<4x512xf32>, i32 -> vector<4x512xf32>
    %60 = vector.extract_strided_slice %7 {offsets = [7, 0], sizes = [1, 512], strides = [1, 1]} : vector<9x512xf32> to vector<1x512xf32>
    %61 = vector.broadcast %60 : vector<1x512xf32> to vector<4x512xf32>
    %62 = arith.mulf %59, %61 : vector<4x512xf32>
    %63 = vector.extract_strided_slice %6 {offsets = [0, 28], sizes = [8, 4], strides = [1, 1]} : vector<8x36xf32> to vector<8x4xf32>
    %cst_14 = arith.constant dense<0.000000e+00> : vector<8x512xf32>
    %64 = tpu.matmul %63, %62, %cst_14 {dimension_numbers = #tpu.dot_dimension_numbers<[1], [0], [0], [1], [0, 0, 1, 1], [], []>} : vector<8x4xf32>, vector<4x512xf32>, vector<8x512xf32> -> vector<8x512xf32>
    %65 = arith.addf %58, %64 : vector<8x512xf32>
    %c495_i32 = arith.constant 495 : i32
    %66 = tpu.dynamic_rotate %5 by %c495_i32 dim 1 : vector<4x512xf32>, i32 -> vector<4x512xf32>
    %67 = vector.extract_strided_slice %7 {offsets = [8, 0], sizes = [1, 512], strides = [1, 1]} : vector<9x512xf32> to vector<1x512xf32>
    %68 = vector.broadcast %67 : vector<1x512xf32> to vector<4x512xf32>
    %69 = arith.mulf %66, %68 : vector<4x512xf32>
    %70 = vector.extract_strided_slice %6 {offsets = [0, 32], sizes = [8, 4], strides = [1, 1]} : vector<8x36xf32> to vector<8x4xf32>
    %cst_15 = arith.constant dense<0.000000e+00> : vector<8x512xf32>
    %71 = tpu.matmul %70, %69, %cst_15 {dimension_numbers = #tpu.dot_dimension_numbers<[1], [0], [0], [1], [0, 0, 1, 1], [], []>} : vector<8x4xf32>, vector<4x512xf32>, vector<8x512xf32> -> vector<8x512xf32>
    %72 = arith.addf %65, %71 : vector<8x512xf32>
    %cst_16 = arith.constant 0.000000e+00 : f32
    %73 = vector.broadcast %cst_16 : f32 to vector<8x512xf32>
    %74 = arith.cmpf oge, %72, %73 : vector<8x512xf32>
    %cst_17 = arith.constant 2.000000e-01 : f32
    %75 = vector.broadcast %cst_17 : f32 to vector<8x512xf32>
    %76 = arith.mulf %75, %72 : vector<8x512xf32>
    %77 = arith.select %74, %72, %76 : vector<8x512xi1>, vector<8x512xf32>
    %78 = vector.extract_strided_slice %77 {offsets = [0, 0], sizes = [8, 256], strides = [1, 1]} : vector<8x512xf32> to vector<8x256xf32>
    %c0_18 = arith.constant 0 : index
    %c0_19 = arith.constant 0 : index
    %c0_20 = arith.constant 0 : index
    %79 = vector.load %arg5[%c0_18, %c0_19, %c0_20] : memref<2x8x256xf32, #tpu.memory_space<vmem>>, vector<1x8x256xf32>
    %80 = vector.shape_cast %79 : vector<1x8x256xf32> to vector<8x256xf32>
    %81 = vector.shape_cast %78 : vector<8x256xf32> to vector<1x8x256xf32>
    tpu.vector_store %arg5[%c0_18, %c0_19, %c0_20], %81 {strides = array<i32>} : memref<2x8x256xf32, #tpu.memory_space<vmem>>, vector<1x8x256xf32>,
    %82 = vector.extract_strided_slice %77 {offsets = [0, 256], sizes = [8, 256], strides = [1, 1]} : vector<8x512xf32> to vector<8x256xf32>
    %c1 = arith.constant 1 : index
    %c0_21 = arith.constant 0 : index
    %c0_22 = arith.constant 0 : index
    %83 = vector.load %arg5[%c1, %c0_21, %c0_22] : memref<2x8x256xf32, #tpu.memory_space<vmem>>, vector<1x8x256xf32>
    %84 = vector.shape_cast %83 : vector<1x8x256xf32> to vector<8x256xf32>
    %85 = vector.shape_cast %82 : vector<8x256xf32> to vector<1x8x256xf32>
    tpu.vector_store %arg5[%c1, %c0_21, %c0_22], %85 {strides = array<i32>} : memref<2x8x256xf32, #tpu.memory_space<vmem>>, vector<1x8x256xf32>,
    return
  }
  func.func @transform_0(%arg0: i32) -> (i32, i32, i32) {
    %c0_i32 = arith.constant 0 : i32
    %c0_i32_0 = arith.constant 0 : i32
    %c0_i32_1 = arith.constant 0 : i32
    return %arg0, %c0_i32, %c0_i32_0 : i32, i32, i32
  }
  func.func @transform_1(%arg0: i32) -> (i32, i32) {
    %c0_i32 = arith.constant 0 : i32
    %c0_i32_0 = arith.constant 0 : i32
    %c0_i32_1 = arith.constant 0 : i32
    return %c0_i32, %c0_i32_0 : i32, i32
  }
  func.func @transform_2(%arg0: i32) -> (i32, i32) {
    %c0_i32 = arith.constant 0 : i32
    %c0_i32_0 = arith.constant 0 : i32
    %c0_i32_1 = arith.constant 0 : i32
    return %c0_i32, %c0_i32_0 : i32, i32
  }
  func.func @transform_3(%arg0: i32) -> (i32, i32) {
    %c0_i32 = arith.constant 0 : i32
    %c0_i32_0 = arith.constant 0 : i32
    %c0_i32_1 = arith.constant 0 : i32
    return %c0_i32, %c0_i32_0 : i32, i32
  }
  func.func @transform_4(%arg0: i32) -> (i32, i32, i32) {
    %c0_i32 = arith.constant 0 : i32
    %c0_i32_0 = arith.constant 0 : i32
    %c0_i32_1 = arith.constant 0 : i32
    return %arg0, %c0_i32, %c0_i32_0 : i32, i32, i32
  }
}

</mosaic_0001>

<llo_original>
// kernel: tpu_custom_call.1
$region0: #{tpu_custom_call.1}
  #allocation0 [shape = 'u32[]', space=smem, size = 0x4, offset = 0x4, fixed_abs, tag = 'smem constant byte address 0x4 - core index']
  #allocation1 [shape = 'u32[144,128]{1,0:T(1,128)}', space=vmem, size = 0x12000, scoped, tag = 'internal scratch']
  %s0 = inlined_call_operand.hbm [shape: f32[2,4,256], index: 0, kind: input, shape index: {}]
  %s1 = inlined_call_operand.vmem [shape: f32[8,36], index: 1, kind: input, shape index: {}]
  %s2 = inlined_call_operand.vmem [shape: f32[8,1], index: 2, kind: input, shape index: {}]
  %s3 = inlined_call_operand.hbm [shape: f32[9,512], index: 3, kind: input, shape index: {}]
  %s4 = inlined_call_operand.hbm [shape: f32[2,8,256], index: 4, kind: output, shape index: {}]
  %s5 = sld [smem:[#allocation0]]
  $region34: #{tpu_custom_call.1} parent=0
    _
  %s7 = ssub.s32 1, %s5
  %s8 = scalar_select 0, %s7, %s5
  $region1: #{tpu_custom_call.1} parent=0
    #allocation2 [shape = 'u8[8192]{0}', space=vmem, size = 0x2000, scoped, tag = 'input window, operand 0, single buffered']
    #allocation3 [shape = 's32[1]{0}', space=sflag, size = 0x4, scoped, tag = 'scoped memory for tpu_custom_call.1']
    #allocation4 [shape = 's32[1]{0}', space=sflag, size = 0x4, scoped, tag = 'scoped memory for tpu_custom_call.1']
    #allocation5 [shape = 'u8[32768]{0}', space=vmem, size = 0x8000, scoped, tag = 'input window, operand 3, single buffered']
    #allocation6 [shape = 's32[1]{0}', space=sflag, size = 0x4, scoped, tag = 'scoped memory for tpu_custom_call.1']
    #allocation7 [shape = 'u8[16384]{0}', space=vmem, size = 0x4000, scoped, tag = 'output window, operand 0, single buffered']
    %9 = vsyncpa [#allocation3], 0
    %10 = vsyncpa [#allocation6], 0
    %11 = vsyncpa [#allocation4], 0
    // Predicated region
    $region2: #{tpu_custom_call.1} parent=1 // pred_check
      _
    $region3: #{tpu_custom_call.1} parent=1 // pred_check_branch
      %13 = sbr.rel (0) target = $region5
    $region4: #{tpu_custom_call.1} parent=1 // pred_region
      %s15 = ssub.s32 256, 256
      %16 = vsyncadd [#allocation3], %s15
      %s17 = sshll.u32 [#allocation2], 4
      %s18 = int_to_ptr.vmem [resolvable:$true] %s17
      %23 = dma.hbm_to_vmem [thread:$0]  %s0, 256, %s18, [#allocation3], 128, 128, 8
    $region5: #{tpu_custom_call.1} parent=1 // pred_fallthru
      _
    // Predicated region
    $region6: #{tpu_custom_call.1} parent=1 // pred_check
      _
    $region7: #{tpu_custom_call.1} parent=1 // pred_check_branch
      %25 = sbr.rel (0) target = $region9
    $region8: #{tpu_custom_call.1} parent=1 // pred_region
      _
    $region9: #{tpu_custom_call.1} parent=1 // pred_fallthru
      _
    // Predicated region
    $region10: #{tpu_custom_call.1} parent=1 // pred_check
      _
    $region11: #{tpu_custom_call.1} parent=1 // pred_check_branch
      %27 = sbr.rel (0) target = $region13
    $region12: #{tpu_custom_call.1} parent=1 // pred_region
      _
    $region13: #{tpu_custom_call.1} parent=1 // pred_fallthru
      _
    // Predicated region
    $region14: #{tpu_custom_call.1} parent=1 // pred_check
      _
    $region15: #{tpu_custom_call.1} parent=1 // pred_check_branch
      %29 = sbr.rel (0) target = $region17
    $region16: #{tpu_custom_call.1} parent=1 // pred_region
      %s31 = ssub.s32 1024, 1024
      %32 = vsyncadd [#allocation6], %s31
      %s33 = sshll.u32 [#allocation5], 4
      %s34 = int_to_ptr.vmem [resolvable:$true] %s33
      %39 = dma.hbm_to_vmem [thread:$0]  %s3, 1024, %s34, [#allocation6], 512, 512, 32
    $region17: #{tpu_custom_call.1} parent=1 // pred_fallthru
      _
    // Predicated region
    $region18: #{tpu_custom_call.1} parent=1 // pred_check
      _
    $region19: #{tpu_custom_call.1} parent=1 // pred_check_branch
      %41 = sbr.rel (0) target = $region21
    $region20: #{tpu_custom_call.1} parent=1 // pred_region
      %42 = dma.done [#allocation3], 256
    $region21: #{tpu_custom_call.1} parent=1 // pred_fallthru
      _
    // Predicated region
    $region22: #{tpu_custom_call.1} parent=1 // pred_check
      _
    $region23: #{tpu_custom_call.1} parent=1 // pred_check_branch
      %44 = sbr.rel (0) target = $region25
    $region24: #{tpu_custom_call.1} parent=1 // pred_region
      %45 = dma.done [#allocation6], 1024
    $region25: #{tpu_custom_call.1} parent=1 // pred_fallthru
      _
    %v46 = vld [vmem:[#allocation2] sm:$0xff]
    %v47 = vld [vmem:[#allocation2 + $0x8] sm:$0xff]
    %v49 = vcombine.high %v46, %v46
    %v52 = vcombine.high %v47, %v47
    %v54 = vld [vmem:[%s1] sm:$0xff]
    %v55 = vld [vmem:[#allocation5] sm:$0xff]
    %v56 = vld [vmem:[#allocation5 + $0x8] sm:$0xff]
    %v57 = vld [vmem:[#allocation5 + $0x10] sm:$0xff]
    %v58 = vld [vmem:[#allocation5 + $0x18] sm:$0xff]
    %v59 = vld [vmem:[#allocation5 + $0x20] sm:$0x1]
    %v60 = vld [vmem:[#allocation5 + $0x28] sm:$0x1]
    %v61 = vld [vmem:[#allocation5 + $0x30] sm:$0x1]
    %v62 = vld [vmem:[#allocation5 + $0x38] sm:$0x1]
    %v63 = vld [vmem:[%s2] sm:$0xff]
    %65 = vset.pattern.permute.xlu0 0
    %66 = vperm.xlu0 %65, %v63
    %v67 = vpop.permute.xlu0 %66
    %69 = vrot.lane.b32.xlu0 %v46, 17
    %v70 = vpop.permute.xlu0 %69
    %71 = vrot.lane.b32.xlu0 %v49, 17
    %v72 = vpop.permute.xlu0 %71
    %73 = vrot.lane.b32.xlu0 %v47, 17
    %v74 = vpop.permute.xlu0 %73
    %75 = vrot.lane.b32.xlu0 %v52, 17
    %v76 = vpop.permute.xlu0 %75
    %v77 = vlaneseq
    %v78 = vand.u32 %v77, 127
    %vm79 = vcmp.lt.s32.totalorder %v78, 17
    %v80 = vsel %vm79, %v74, %v76
    %v81 = vsel %vm79, %v72, %v74
    %v82 = vsel %vm79, %v70, %v72
    %v83 = vsel %vm79, %v76, %v70
    %v84 = vlaneseq
    %v85 = vshrl.u32 %v84, 7
    %v86 = vsub.s32 0, %v85
    %v87 = vrot.slane %v55, %v86
    %v88 = vlaneseq
    %v89 = vshrl.u32 %v88, 7
    %v90 = vsub.s32 0, %v89
    %v91 = vrot.slane %v56, %v90
    %v92 = vlaneseq
    %v93 = vshrl.u32 %v92, 7
    %v94 = vsub.s32 0, %v93
    %v95 = vrot.slane %v57, %v94
    %v96 = vlaneseq
    %v97 = vshrl.u32 %v96, 7
    %v98 = vsub.s32 0, %v97
    %v99 = vrot.slane %v58, %v98
    %v100 = vmul.f32 %v83, %v87
    %v101 = vmul.f32 %v82, %v91
    %v102 = vmul.f32 %v81, %v95
    %v103 = vmul.f32 %v80, %v99
    %vm104 = vcmask 31744
    %v106 = vsel %vm104, %v54, 0
    %vm108 = vcmask 1043456
    %v110 = vsel %vm108, %v100, 0
    %v113 = vsel %vm108, %v101, 0
    %v116 = vsel %vm108, %v102, 0
    %v119 = vsel %vm108, %v103, 0
    %121 = vmatprep.subr.mxu0 %v113
    %122 = vmatpush1.msra.mxu0 %v110
    %123 = vmatprep.subr.mxu0 0.0
    %124 = vmatpush1.msra.mxu0 0.0
    %125 = vmatprep.subr.mxu0 0.0
    %126 = vmatpush1.msra.mxu0 0.0
    %127 = vmatprep.subr.mxu0 0.0
    %128 = vmatpush1.msra.mxu0 0.0
    %129 = vmatprep.subr.mxu0 0.0
    %130 = vmatpush1.msra.mxu0 0.0
    %131 = vmatprep.subr.mxu0 0.0
    %132 = vmatpush1.msra.mxu0 0.0
    %133 = vmatprep.subr.mxu0 0.0
    %134 = vmatpush1.msra.mxu0 0.0
    %135 = vmatprep.subr.mxu0 0.0
    %136 = vmatpush1.msra.mxu0 0.0
    %137 = vmatprep.subr.mxu0 0.0
    %138 = vmatpush1.msra.mxu0 0.0
    %139 = vmatprep.subr.mxu0 0.0
    %140 = vmatpush1.msra.mxu0 0.0
    %141 = vmatprep.subr.mxu0 0.0
    %142 = vmatpush1.msra.mxu0 0.0
    %143 = vmatprep.subr.mxu0 0.0
    %144 = vmatpush1.msra.mxu0 0.0
    %145 = vmatprep.subr.mxu0 0.0
    %146 = vmatpush1.msra.mxu0 0.0
    %147 = vmatprep.subr.mxu0 0.0
    %148 = vmatpush1.msra.mxu0 0.0
    %149 = vmatprep.subr.mxu0 0.0
    %150 = vmatpush1.msra.mxu0 0.0
    %151 = vmatprep.subr.mxu0 0.0
    %152 = vmatpush1.msra.mxu0 0.0
    %153 = vmatprep.subr.mxu0 0.0
    %154 = vmatpush1.msra.mxu0 0.0
    %155 = vmatprep.subr.mxu0 0.0
    %156 = vmatpush1.msra.mxu0 0.0
    %157 = vmatprep.subr.mxu0 0.0
    %158 = vmatpush1.msra.mxu0 0.0
    %159 = vmatprep.subr.mxu0 0.0
    %160 = vmatpush1.msra.mxu0 0.0
    %161 = vmatprep.subr.mxu0 0.0
    %162 = vmatpush1.msra.mxu0 0.0
    %163 = vmatprep.subr.mxu0 0.0
    %164 = vmatpush1.msra.mxu0 0.0
    %165 = vmatprep.subr.mxu0 0.0
    %166 = vmatpush1.msra.mxu0 0.0
    %167 = vmatprep.subr.mxu0 0.0
    %168 = vmatpush1.msra.mxu0 0.0
    %169 = vmatprep.subr.mxu0 0.0
    %170 = vmatpush1.msra.mxu0 0.0
    %171 = vmatprep.subr.mxu0 0.0
    %172 = vmatpush1.msra.mxu0 0.0
    %173 = vmatprep.subr.mxu0 0.0
    %174 = vmatpush1.msra.mxu0 0.0
    %175 = vmatprep.subr.mxu0 0.0
    %176 = vmatpush1.msra.mxu0 0.0
    %177 = vmatprep.subr.mxu0 0.0
    %178 = vmatpush1.msra.mxu0 0.0
    %179 = vmatprep.subr.mxu0 0.0
    %180 = vmatpush1.msra.mxu0 0.0
    %181 = vmatprep.subr.mxu0 0.0
    %182 = vmatpush1.msra.mxu0 0.0
    %183 = vmatprep.subr.mxu0 0.0
    %184 = vmatpush1.msra.mxu0 0.0
    %185 = vmatprep.mubr.f32.mxu0 0.0
    %186 = vmatmul.mubr.f32.gmra.mrb[0].mxu0 %v106
    %v187 = vpop.f32.mrb[0].mxu0
    %v188 = vadd.f32 0.0, %v187
    %v189 = vpop.f32.mrb[0].mxu0
    %v190 = vadd.f32 0.0, %v189
    %191 = vdwg.mxu0
    %192 = vmatprep.subr.mxu0 %v119
    %193 = vmatpush1.msra.mxu0 %v116
    %194 = vmatprep.subr.mxu0 0.0
    %195 = vmatpush1.msra.mxu0 0.0
    %196 = vmatprep.subr.mxu0 0.0
    %197 = vmatpush1.msra.mxu0 0.0
    %198 = vmatprep.subr.mxu0 0.0
    %199 = vmatpush1.msra.mxu0 0.0
    %200 = vmatprep.subr.mxu0 0.0
    %201 = vmatpush1.msra.mxu0 0.0
    %202 = vmatprep.subr.mxu0 0.0
    %203 = vmatpush1.msra.mxu0 0.0
    %204 = vmatprep.subr.mxu0 0.0
    %205 = vmatpush1.msra.mxu0 0.0
    %206 = vmatprep.subr.mxu0 0.0
    %207 = vmatpush1.msra.mxu0 0.0
    %208 = vmatprep.subr.mxu0 0.0
    %209 = vmatpush1.msra.mxu0 0.0
    %210 = vmatprep.subr.mxu0 0.0
    %211 = vmatpush1.msra.mxu0 0.0
    %212 = vmatprep.subr.mxu0 0.0
    %213 = vmatpush1.msra.mxu0 0.0
    %214 = vmatprep.subr.mxu0 0.0
    %215 = vmatpush1.msra.mxu0 0.0
    %216 = vmatprep.subr.mxu0 0.0
    %217 = vmatpush1.msra.mxu0 0.0
    %218 = vmatprep.subr.mxu0 0.0
    %219 = vmatpush1.msra.mxu0 0.0
    %220 = vmatprep.subr.mxu0 0.0
    %221 = vmatpush1.msra.mxu0 0.0
    %222 = vmatprep.subr.mxu0 0.0
    %223 = vmatpush1.msra.mxu0 0.0
    %224 = vmatprep.subr.mxu0 0.0
    %225 = vmatpush1.msra.mxu0 0.0
    %226 = vmatprep.subr.mxu0 0.0
    %227 = vmatpush1.msra.mxu0 0.0
    %228 = vmatprep.subr.mxu0 0.0
    %229 = vmatpush1.msra.mxu0 0.0
    %230 = vmatprep.subr.mxu0 0.0
    %231 = vmatpush1.msra.mxu0 0.0
    %232 = vmatprep.subr.mxu0 0.0
    %233 = vmatpush1.msra.mxu0 0.0
    %234 = vmatprep.subr.mxu0 0.0
    %235 = vmatpush1.msra.mxu0 0.0
    %236 = vmatprep.subr.mxu0 0.0
    %237 = vmatpush1.msra.mxu0 0.0
    %238 = vmatprep.subr.mxu0 0.0
    %239 = vmatpush1.msra.mxu0 0.0
    %240 = vmatprep.subr.mxu0 0.0
    %241 = vmatpush1.msra.mxu0 0.0
    %242 = vmatprep.subr.mxu0 0.0
    %243 = vmatpush1.msra.mxu0 0.0
    %244 = vmatprep.subr.mxu0 0.0
    %245 = vmatpush1.msra.mxu0 0.0
    %246 = vmatprep.subr.mxu0 0.0
    %247 = vmatpush1.msra.mxu0 0.0
    %248 = vmatprep.subr.mxu0 0.0
    %249 = vmatpush1.msra.mxu0 0.0
    %250 = vmatprep.subr.mxu0 0.0
    %251 = vmatpush1.msra.mxu0 0.0
    %252 = vmatprep.subr.mxu0 0.0
    %253 = vmatpush1.msra.mxu0 0.0
    %254 = vmatprep.subr.mxu0 0.0
    %255 = vmatpush1.msra.mxu0 0.0
    %256 = vmatprep.mubr.f32.mxu0 0.0
    %257 = vmatmul.mubr.f32.gmra.mrb[0].mxu0 %v106
    %v258 = vpop.f32.mrb[0].mxu0
    %v259 = vadd.f32 0.0, %v258
    %v260 = vpop.f32.mrb[0].mxu0
    %v261 = vadd.f32 0.0, %v260
    %262 = vdwg.mxu0
    %v263 = vadd.f32 %v67, %v188
    %v264 = vadd.f32 %v67, %v190
    %v265 = vadd.f32 %v67, %v259
    %v266 = vadd.f32 %v67, %v261
    %267 = vrot.lane.b32.xlu0 %v46, 16
    %v268 = vpop.permute.xlu0 %267
    %269 = vrot.lane.b32.xlu0 %v49, 16
    %v270 = vpop.permute.xlu0 %269
    %271 = vrot.lane.b32.xlu0 %v47, 16
    %v272 = vpop.permute.xlu0 %271
    %273 = vrot.lane.b32.xlu0 %v52, 16
    %v274 = vpop.permute.xlu0 %273
    %vm275 = vcmp.lt.s32.totalorder %v78, 16
    %v276 = vsel %vm275, %v272, %v274
    %v277 = vsel %vm275, %v270, %v272
    %v278 = vsel %vm275, %v268, %v270
    %v279 = vsel %vm275, %v274, %v268
    %v280 = vlaneseq
    %v281 = vshrl.u32 %v280, 7
    %v282 = vsub.s32 1, %v281
    %v283 = vrot.slane %v55, %v282
    %v284 = vlaneseq
    %v285 = vshrl.u32 %v284, 7
    %v286 = vsub.s32 1, %v285
    %v287 = vrot.slane %v56, %v286
    %v288 = vlaneseq
    %v289 = vshrl.u32 %v288, 7
    %v290 = vsub.s32 1, %v289
    %v291 = vrot.slane %v57, %v290
    %v292 = vlaneseq
    %v293 = vshrl.u32 %v292, 7
    %v294 = vsub.s32 1, %v293
    %v295 = vrot.slane %v58, %v294
    %v296 = vmul.f32 %v279, %v283
    %v297 = vmul.f32 %v278, %v287
    %v298 = vmul.f32 %v277, %v291
    %v299 = vmul.f32 %v276, %v295
    %300 = vrot.lane.b32.xlu0 %v54, 124
    %v301 = vpop.permute.xlu0 %300
    %v302 = vsel %vm104, %v301, 0
    %v305 = vsel %vm108, %v296, 0
    %v308 = vsel %vm108, %v297, 0
    %v311 = vsel %vm108, %v298, 0
    %v314 = vsel %vm108, %v299, 0
    %316 = vmatprep.subr.mxu0 %v308
    %317 = vmatpush1.msra.mxu0 %v305
    %318 = vmatprep.subr.mxu0 0.0
    %319 = vmatpush1.msra.mxu0 0.0
    %320 = vmatprep.subr.mxu0 0.0
    %321 = vmatpush1.msra.mxu0 0.0
    %322 = vmatprep.subr.mxu0 0.0
    %323 = vmatpush1.msra.mxu0 0.0
    %324 = vmatprep.subr.mxu0 0.0
    %325 = vmatpush1.msra.mxu0 0.0
    %326 = vmatprep.subr.mxu0 0.0
    %327 = vmatpush1.msra.mxu0 0.0
    %328 = vmatprep.subr.mxu0 0.0
    %329 = vmatpush1.msra.mxu0 0.0
    %330 = vmatprep.subr.mxu0 0.0
    %331 = vmatpush1.msra.mxu0 0.0
    %332 = vmatprep.subr.mxu0 0.0
    %333 = vmatpush1.msra.mxu0 0.0
    %334 = vmatprep.subr.mxu0 0.0
    %335 = vmatpush1.msra.mxu0 0.0
    %336 = vmatprep.subr.mxu0 0.0
    %337 = vmatpush1.msra.mxu0 0.0
    %338 = vmatprep.subr.mxu0 0.0
    %339 = vmatpush1.msra.mxu0 0.0
    %340 = vmatprep.subr.mxu0 0.0
    %341 = vmatpush1.msra.mxu0 0.0
    %342 = vmatprep.subr.mxu0 0.0
    %343 = vmatpush1.msra.mxu0 0.0
    %344 = vmatprep.subr.mxu0 0.0
    %345 = vmatpush1.msra.mxu0 0.0
    %346 = vmatprep.subr.mxu0 0.0
    %347 = vmatpush1.msra.mxu0 0.0
    %348 = vmatprep.subr.mxu0 0.0
    %349 = vmatpush1.msra.mxu0 0.0
    %350 = vmatprep.subr.mxu0 0.0
    %351 = vmatpush1.msra.mxu0 0.0
    %352 = vmatprep.subr.mxu0 0.0
    %353 = vmatpush1.msra.mxu0 0.0
    %354 = vmatprep.subr.mxu0 0.0
    %355 = vmatpush1.msra.mxu0 0.0
    %356 = vmatprep.subr.mxu0 0.0
    %357 = vmatpush1.msra.mxu0 0.0
    %358 = vmatprep.subr.mxu0 0.0
    %359 = vmatpush1.msra.mxu0 0.0
    %360 = vmatprep.subr.mxu0 0.0
    %361 = vmatpush1.msra.mxu0 0.0
    %362 = vmatprep.subr.mxu0 0.0
    %363 = vmatpush1.msra.mxu0 0.0
    %364 = vmatprep.subr.mxu0 0.0
    %365 = vmatpush1.msra.mxu0 0.0
    %366 = vmatprep.subr.mxu0 0.0
    %367 = vmatpush1.msra.mxu0 0.0
    %368 = vmatprep.subr.mxu0 0.0
    %369 = vmatpush1.msra.mxu0 0.0
    %370 = vmatprep.subr.mxu0 0.0
    %371 = vmatpush1.msra.mxu0 0.0
    %372 = vmatprep.subr.mxu0 0.0
    %373 = vmatpush1.msra.mxu0 0.0
    %374 = vmatprep.subr.mxu0 0.0
    %375 = vmatpush1.msra.mxu0 0.0
    %376 = vmatprep.subr.mxu0 0.0
    %377 = vmatpush1.msra.mxu0 0.0
    %378 = vmatprep.subr.mxu0 0.0
    %379 = vmatpush1.msra.mxu0 0.0
    %380 = vmatprep.mubr.f32.mxu0 0.0
    %381 = vmatmul.mubr.f32.gmra.mrb[0].mxu0 %v302
    %v382 = vpop.f32.mrb[0].mxu0
    %v383 = vadd.f32 0.0, %v382
    %v384 = vpop.f32.mrb[0].mxu0
    %v385 = vadd.f32 0.0, %v384
    %386 = vdwg.mxu0
    %387 = vmatprep.subr.mxu0 %v314
    %388 = vmatpush1.msra.mxu0 %v311
    %389 = vmatprep.subr.mxu0 0.0
    %390 = vmatpush1.msra.mxu0 0.0
    %391 = vmatprep.subr.mxu0 0.0
    %392 = vmatpush1.msra.mxu0 0.0
    %393 = vmatprep.subr.mxu0 0.0
    %394 = vmatpush1.msra.mxu0 0.0
    %395 = vmatprep.subr.mxu0 0.0
    %396 = vmatpush1.msra.mxu0 0.0
    %397 = vmatprep.subr.mxu0 0.0
    %398 = vmatpush1.msra.mxu0 0.0
    %399 = vmatprep.subr.mxu0 0.0
    %400 = vmatpush1.msra.mxu0 0.0
    %401 = vmatprep.subr.mxu0 0.0
    %402 = vmatpush1.msra.mxu0 0.0
    %403 = vmatprep.subr.mxu0 0.0
    %404 = vmatpush1.msra.mxu0 0.0
    %405 = vmatprep.subr.mxu0 0.0
    %406 = vmatpush1.msra.mxu0 0.0
    %407 = vmatprep.subr.mxu0 0.0
    %408 = vmatpush1.msra.mxu0 0.0
    %409 = vmatprep.subr.mxu0 0.0
    %410 = vmatpush1.msra.mxu0 0.0
    %411 = vmatprep.subr.mxu0 0.0
    %412 = vmatpush1.msra.mxu0 0.0
    %413 = vmatprep.subr.mxu0 0.0
    %414 = vmatpush1.msra.mxu0 0.0
    %415 = vmatprep.subr.mxu0 0.0
    %416 = vmatpush1.msra.mxu0 0.0
    %417 = vmatprep.subr.mxu0 0.0
    %418 = vmatpush1.msra.mxu0 0.0
    %419 = vmatprep.subr.mxu0 0.0
    %420 = vmatpush1.msra.mxu0 0.0
    %421 = vmatprep.subr.mxu0 0.0
    %422 = vmatpush1.msra.mxu0 0.0
    %423 = vmatprep.subr.mxu0 0.0
    %424 = vmatpush1.msra.mxu0 0.0
    %425 = vmatprep.subr.mxu0 0.0
    %426 = vmatpush1.msra.mxu0 0.0
    %427 = vmatprep.subr.mxu0 0.0
    %428 = vmatpush1.msra.mxu0 0.0
    %429 = vmatprep.subr.mxu0 0.0
    %430 = vmatpush1.msra.mxu0 0.0
    %431 = vmatprep.subr.mxu0 0.0
    %432 = vmatpush1.msra.mxu0 0.0
    %433 = vmatprep.subr.mxu0 0.0
    %434 = vmatpush1.msra.mxu0 0.0
    %435 = vmatprep.subr.mxu0 0.0
    %436 = vmatpush1.msra.mxu0 0.0
    %437 = vmatprep.subr.mxu0 0.0
    %438 = vmatpush1.msra.mxu0 0.0
    %439 = vmatprep.subr.mxu0 0.0
    %440 = vmatpush1.msra.mxu0 0.0
    %441 = vmatprep.subr.mxu0 0.0
    %442 = vmatpush1.msra.mxu0 0.0
    %443 = vmatprep.subr.mxu0 0.0
    %444 = vmatpush1.msra.mxu0 0.0
    %445 = vmatprep.subr.mxu0 0.0
    %446 = vmatpush1.msra.mxu0 0.0
    %447 = vmatprep.subr.mxu0 0.0
    %448 = vmatpush1.msra.mxu0 0.0
    %449 = vmatprep.subr.mxu0 0.0
    %450 = vmatpush1.msra.mxu0 0.0
    %451 = vmatprep.mubr.f32.mxu0 0.0
    %452 = vmatmul.mubr.f32.gmra.mrb[0].mxu0 %v302
    %v453 = vpop.f32.mrb[0].mxu0
    %v454 = vadd.f32 0.0, %v453
    %v455 = vpop.f32.mrb[0].mxu0
    %v456 = vadd.f32 0.0, %v455
    %457 = vdwg.mxu0
    %v458 = vadd.f32 %v263, %v383
    %v459 = vadd.f32 %v264, %v385
    %v460 = vadd.f32 %v265, %v454
    %v461 = vadd.f32 %v266, %v456
    %462 = vrot.lane.b32.xlu0 %v46, 15
    %v463 = vpop.permute.xlu0 %462
    %464 = vrot.lane.b32.xlu0 %v49, 15
    %v465 = vpop.permute.xlu0 %464
    %466 = vrot.lane.b32.xlu0 %v47, 15
    %v467 = vpop.permute.xlu0 %466
    %468 = vrot.lane.b32.xlu0 %v52, 15
    %v469 = vpop.permute.xlu0 %468
    %vm470 = vcmp.lt.s32.totalorder %v78, 15
    %v471 = vsel %vm470, %v467, %v469
    %v472 = vsel %vm470, %v465, %v467
    %v473 = vsel %vm470, %v463, %v465
    %v474 = vsel %vm470, %v469, %v463
    %v475 = vlaneseq
    %v476 = vshrl.u32 %v475, 7
    %v477 = vsub.s32 2, %v476
    %v478 = vrot.slane %v55, %v477
    %v479 = vlaneseq
    %v480 = vshrl.u32 %v479, 7
    %v481 = vsub.s32 2, %v480
    %v482 = vrot.slane %v56, %v481
    %v483 = vlaneseq
    %v484 = vshrl.u32 %v483, 7
    %v485 = vsub.s32 2, %v484
    %v486 = vrot.slane %v57, %v485
    %v487 = vlaneseq
    %v488 = vshrl.u32 %v487, 7
    %v489 = vsub.s32 2, %v488
    %v490 = vrot.slane %v58, %v489
    %v491 = vmul.f32 %v474, %v478
    %v492 = vmul.f32 %v473, %v482
    %v493 = vmul.f32 %v472, %v486
    %v494 = vmul.f32 %v471, %v490
    %495 = vrot.lane.b32.xlu0 %v54, 120
    %v496 = vpop.permute.xlu0 %495
    %v497 = vsel %vm104, %v496, 0
    %v500 = vsel %vm108, %v491, 0
    %v503 = vsel %vm108, %v492, 0
    %v506 = vsel %vm108, %v493, 0
    %v509 = vsel %vm108, %v494, 0
    %511 = vmatprep.subr.mxu0 %v503
    %512 = vmatpush1.msra.mxu0 %v500
    %513 = vmatprep.subr.mxu0 0.0
    %514 = vmatpush1.msra.mxu0 0.0
    %515 = vmatprep.subr.mxu0 0.0
    %516 = vmatpush1.msra.mxu0 0.0
    %517 = vmatprep.subr.mxu0 0.0
    %518 = vmatpush1.msra.mxu0 0.0
    %519 = vmatprep.subr.mxu0 0.0
    %520 = vmatpush1.msra.mxu0 0.0
    %521 = vmatprep.subr.mxu0 0.0
    %522 = vmatpush1.msra.mxu0 0.0
    %523 = vmatprep.subr.mxu0 0.0
    %524 = vmatpush1.msra.mxu0 0.0
    %525 = vmatprep.subr.mxu0 0.0
    %526 = vmatpush1.msra.mxu0 0.0
    %527 = vmatprep.subr.mxu0 0.0
    %528 = vmatpush1.msra.mxu0 0.0
    %529 = vmatprep.subr.mxu0 0.0
    %530 = vmatpush1.msra.mxu0 0.0
    %531 = vmatprep.subr.mxu0 0.0
    %532 = vmatpush1.msra.mxu0 0.0
    %533 = vmatprep.subr.mxu0 0.0
    %534 = vmatpush1.msra.mxu0 0.0
    %535 = vmatprep.subr.mxu0 0.0
    %536 = vmatpush1.msra.mxu0 0.0
    %537 = vmatprep.subr.mxu0 0.0
    %538 = vmatpush1.msra.mxu0 0.0
    %539 = vmatprep.subr.mxu0 0.0
    %540 = vmatpush1.msra.mxu0 0.0
    %541 = vmatprep.subr.mxu0 0.0
    %542 = vmatpush1.msra.mxu0 0.0
    %543 = vmatprep.subr.mxu0 0.0
    %544 = vmatpush1.msra.mxu0 0.0
    %545 = vmatprep.subr.mxu0 0.0
    %546 = vmatpush1.msra.mxu0 0.0
    %547 = vmatprep.subr.mxu0 0.0
    %548 = vmatpush1.msra.mxu0 0.0
    %549 = vmatprep.subr.mxu0 0.0
    %550 = vmatpush1.msra.mxu0 0.0
    %551 = vmatprep.subr.mxu0 0.0
    %552 = vmatpush1.msra.mxu0 0.0
    %553 = vmatprep.subr.mxu0 0.0
    %554 = vmatpush1.msra.mxu0 0.0
    %555 = vmatprep.subr.mxu0 0.0
    %556 = vmatpush1.msra.mxu0 0.0
    %557 = vmatprep.subr.mxu0 0.0
    %558 = vmatpush1.msra.mxu0 0.0
    %559 = vmatprep.subr.mxu0 0.0
    %560 = vmatpush1.msra.mxu0 0.0
    %561 = vmatprep.subr.mxu0 0.0
    %562 = vmatpush1.msra.mxu0 0.0
    %563 = vmatprep.subr.mxu0 0.0
    %564 = vmatpush1.msra.mxu0 0.0
    %565 = vmatprep.subr.mxu0 0.0
    %566 = vmatpush1.msra.mxu0 0.0
    %567 = vmatprep.subr.mxu0 0.0
    %568 = vmatpush1.msra.mxu0 0.0
    %569 = vmatprep.subr.mxu0 0.0
    %570 = vmatpush1.msra.mxu0 0.0
    %571 = vmatprep.subr.mxu0 0.0
    %572 = vmatpush1.msra.mxu0 0.0
    %573 = vmatprep.subr.mxu0 0.0
    %574 = vmatpush1.msra.mxu0 0.0
    %575 = vmatprep.mubr.f32.mxu0 0.0
    %576 = vmatmul.mubr.f32.gmra.mrb[0].mxu0 %v497
    %v577 = vpop.f32.mrb[0].mxu0
    %v578 = vadd.f32 0.0, %v577
    %v579 = vpop.f32.mrb[0].mxu0
    %v580 = vadd.f32 0.0, %v579
    %581 = vdwg.mxu0
    %582 = vmatprep.subr.mxu0 %v509
    %583 = vmatpush1.msra.mxu0 %v506
    %584 = vmatprep.subr.mxu0 0.0
    %585 = vmatpush1.msra.mxu0 0.0
    %586 = vmatprep.subr.mxu0 0.0
    %587 = vmatpush1.msra.mxu0 0.0
    %588 = vmatprep.subr.mxu0 0.0
    %589 = vmatpush1.msra.mxu0 0.0
    %590 = vmatprep.subr.mxu0 0.0
    %591 = vmatpush1.msra.mxu0 0.0
    %592 = vmatprep.subr.mxu0 0.0
    %593 = vmatpush1.msra.mxu0 0.0
    %594 = vmatprep.subr.mxu0 0.0
    %595 = vmatpush1.msra.mxu0 0.0
    %596 = vmatprep.subr.mxu0 0.0
    %597 = vmatpush1.msra.mxu0 0.0
    %598 = vmatprep.subr.mxu0 0.0
    %599 = vmatpush1.msra.mxu0 0.0
    %600 = vmatprep.subr.mxu0 0.0
    %601 = vmatpush1.msra.mxu0 0.0
    %602 = vmatprep.subr.mxu0 0.0
    %603 = vmatpush1.msra.mxu0 0.0
    %604 = vmatprep.subr.mxu0 0.0
    %605 = vmatpush1.msra.mxu0 0.0
    %606 = vmatprep.subr.mxu0 0.0
    %607 = vmatpush1.msra.mxu0 0.0
    %608 = vmatprep.subr.mxu0 0.0
    %609 = vmatpush1.msra.mxu0 0.0
    %610 = vmatprep.subr.mxu0 0.0
    %611 = vmatpush1.msra.mxu0 0.0
    %612 = vmatprep.subr.mxu0 0.0
    %613 = vmatpush1.msra.mxu0 0.0
    %614 = vmatprep.subr.mxu0 0.0
    %615 = vmatpush1.msra.mxu0 0.0
    %616 = vmatprep.subr.mxu0 0.0
    %617 = vmatpush1.msra.mxu0 0.0
    %618 = vmatprep.subr.mxu0 0.0
    %619 = vmatpush1.msra.mxu0 0.0
    %620 = vmatprep.subr.mxu0 0.0
    %621 = vmatpush1.msra.mxu0 0.0
    %622 = vmatprep.subr.mxu0 0.0
    %623 = vmatpush1.msra.mxu0 0.0
    %624 = vmatprep.subr.mxu0 0.0
    %625 = vmatpush1.msra.mxu0 0.0
    %626 = vmatprep.subr.mxu0 0.0
    %627 = vmatpush1.msra.mxu0 0.0
    %628 = vmatprep.subr.mxu0 0.0
    %629 = vmatpush1.msra.mxu0 0.0
    %630 = vmatprep.subr.mxu0 0.0
    %631 = vmatpush1.msra.mxu0 0.0
    %632 = vmatprep.subr.mxu0 0.0
    %633 = vmatpush1.msra.mxu0 0.0
    %634 = vmatprep.subr.mxu0 0.0
    %635 = vmatpush1.msra.mxu0 0.0
    %636 = vmatprep.subr.mxu0 0.0
    %637 = vmatpush1.msra.mxu0 0.0
    %638 = vmatprep.subr.mxu0 0.0
    %639 = vmatpush1.msra.mxu0 0.0
    %640 = vmatprep.subr.mxu0 0.0
    %641 = vmatpush1.msra.mxu0 0.0
    %642 = vmatprep.subr.mxu0 0.0
    %643 = vmatpush1.msra.mxu0 0.0
    %644 = vmatprep.subr.mxu0 0.0
    %645 = vmatpush1.msra.mxu0 0.0
    %646 = vmatprep.mubr.f32.mxu0 0.0
    %647 = vmatmul.mubr.f32.gmra.mrb[0].mxu0 %v497
    %v648 = vpop.f32.mrb[0].mxu0
    %v649 = vadd.f32 0.0, %v648
    %v650 = vpop.f32.mrb[0].mxu0
    %v651 = vadd.f32 0.0, %v650
    %652 = vdwg.mxu0
    %v653 = vadd.f32 %v458, %v578
    %v654 = vadd.f32 %v459, %v580
    %v655 = vadd.f32 %v460, %v649
    %v656 = vadd.f32 %v461, %v651
    %657 = vrot.lane.b32.xlu0 %v46, 1
    %v658 = vpop.permute.xlu0 %657
    %659 = vrot.lane.b32.xlu0 %v49, 1
    %v660 = vpop.permute.xlu0 %659
    %661 = vrot.lane.b32.xlu0 %v47, 1
    %v662 = vpop.permute.xlu0 %661
    %663 = vrot.lane.b32.xlu0 %v52, 1
    %v664 = vpop.permute.xlu0 %663
    %vm665 = vcmp.lt.s32.totalorder %v78, 1
    %v666 = vsel %vm665, %v662, %v664
    %v667 = vsel %vm665, %v660, %v662
    %v668 = vsel %vm665, %v658, %v660
    %v669 = vsel %vm665, %v664, %v658
    %v670 = vlaneseq
    %v671 = vshrl.u32 %v670, 7
    %v672 = vsub.s32 3, %v671
    %v673 = vrot.slane %v55, %v672
    %v674 = vlaneseq
    %v675 = vshrl.u32 %v674, 7
    %v676 = vsub.s32 3, %v675
    %v677 = vrot.slane %v56, %v676
    %v678 = vlaneseq
    %v679 = vshrl.u32 %v678, 7
    %v680 = vsub.s32 3, %v679
    %v681 = vrot.slane %v57, %v680
    %v682 = vlaneseq
    %v683 = vshrl.u32 %v682, 7
    %v684 = vsub.s32 3, %v683
    %v685 = vrot.slane %v58, %v684
    %v686 = vmul.f32 %v669, %v673
    %v687 = vmul.f32 %v668, %v677
    %v688 = vmul.f32 %v667, %v681
    %v689 = vmul.f32 %v666, %v685
    %690 = vrot.lane.b32.xlu0 %v54, 116
    %v691 = vpop.permute.xlu0 %690
    %v692 = vsel %vm104, %v691, 0
    %v695 = vsel %vm108, %v686, 0
    %v698 = vsel %vm108, %v687, 0
    %v701 = vsel %vm108, %v688, 0
    %v704 = vsel %vm108, %v689, 0
    %706 = vmatprep.subr.mxu0 %v698
    %707 = vmatpush1.msra.mxu0 %v695
    %708 = vmatprep.subr.mxu0 0.0
    %709 = vmatpush1.msra.mxu0 0.0
    %710 = vmatprep.subr.mxu0 0.0
    %711 = vmatpush1.msra.mxu0 0.0
    %712 = vmatprep.subr.mxu0 0.0
    %713 = vmatpush1.msra.mxu0 0.0
    %714 = vmatprep.subr.mxu0 0.0
    %715 = vmatpush1.msra.mxu0 0.0
    %716 = vmatprep.subr.mxu0 0.0
    %717 = vmatpush1.msra.mxu0 0.0
    %718 = vmatprep.subr.mxu0 0.0
    %719 = vmatpush1.msra.mxu0 0.0
    %720 = vmatprep.subr.mxu0 0.0
    %721 = vmatpush1.msra.mxu0 0.0
    %722 = vmatprep.subr.mxu0 0.0
    %723 = vmatpush1.msra.mxu0 0.0
    %724 = vmatprep.subr.mxu0 0.0
    %725 = vmatpush1.msra.mxu0 0.0
    %726 = vmatprep.subr.mxu0 0.0
    %727 = vmatpush1.msra.mxu0 0.0
    %728 = vmatprep.subr.mxu0 0.0
    %729 = vmatpush1.msra.mxu0 0.0
    %730 = vmatprep.subr.mxu0 0.0
    %731 = vmatpush1.msra.mxu0 0.0
    %732 = vmatprep.subr.mxu0 0.0
    %733 = vmatpush1.msra.mxu0 0.0
    %734 = vmatprep.subr.mxu0 0.0
    %735 = vmatpush1.msra.mxu0 0.0
    %736 = vmatprep.subr.mxu0 0.0
    %737 = vmatpush1.msra.mxu0 0.0
    %738 = vmatprep.subr.mxu0 0.0
    %739 = vmatpush1.msra.mxu0 0.0
    %740 = vmatprep.subr.mxu0 0.0
    %741 = vmatpush1.msra.mxu0 0.0
    %742 = vmatprep.subr.mxu0 0.0
    %743 = vmatpush1.msra.mxu0 0.0
    %744 = vmatprep.subr.mxu0 0.0
    %745 = vmatpush1.msra.mxu0 0.0
    %746 = vmatprep.subr.mxu0 0.0
    %747 = vmatpush1.msra.mxu0 0.0
    %748 = vmatprep.subr.mxu0 0.0
    %749 = vmatpush1.msra.mxu0 0.0
    %750 = vmatprep.subr.mxu0 0.0
    %751 = vmatpush1.msra.mxu0 0.0
    %752 = vmatprep.subr.mxu0 0.0
    %753 = vmatpush1.msra.mxu0 0.0
    %754 = vmatprep.subr.mxu0 0.0
    %755 = vmatpush1.msra.mxu0 0.0
    %756 = vmatprep.subr.mxu0 0.0
    %757 = vmatpush1.msra.mxu0 0.0
    %758 = vmatprep.subr.mxu0 0.0
    %759 = vmatpush1.msra.mxu0 0.0
    %760 = vmatprep.subr.mxu0 0.0
    %761 = vmatpush1.msra.mxu0 0.0
    %762 = vmatprep.subr.mxu0 0.0
    %763 = vmatpush1.msra.mxu0 0.0
    %764 = vmatprep.subr.mxu0 0.0
    %765 = vmatpush1.msra.mxu0 0.0
    %766 = vmatprep.subr.mxu0 0.0
    %767 = vmatpush1.msra.mxu0 0.0
    %768 = vmatprep.subr.mxu0 0.0
    %769 = vmatpush1.msra.mxu0 0.0
    %770 = vmatprep.mubr.f32.mxu0 0.0
    %771 = vmatmul.mubr.f32.gmra.mrb[0].mxu0 %v692
    %v772 = vpop.f32.mrb[0].mxu0
    %v773 = vadd.f32 0.0, %v772
    %v774 = vpop.f32.mrb[0].mxu0
    %v775 = vadd.f32 0.0, %v774
    %776 = vdwg.mxu0
    %777 = vmatprep.subr.mxu0 %v704
    %778 = vmatpush1.msra.mxu0 %v701
    %779 = vmatprep.subr.mxu0 0.0
    %780 = vmatpush1.msra.mxu0 0.0
    %781 = vmatprep.subr.mxu0 0.0
    %782 = vmatpush1.msra.mxu0 0.0
    %783 = vmatprep.subr.mxu0 0.0
    %784 = vmatpush1.msra.mxu0 0.0
    %785 = vmatprep.subr.mxu0 0.0
    %786 = vmatpush1.msra.mxu0 0.0
    %787 = vmatprep.subr.mxu0 0.0
    %788 = vmatpush1.msra.mxu0 0.0
    %789 = vmatprep.subr.mxu0 0.0
    %790 = vmatpush1.msra.mxu0 0.0
    %791 = vmatprep.subr.mxu0 0.0
    %792 = vmatpush1.msra.mxu0 0.0
    %793 = vmatprep.subr.mxu0 0.0
    %794 = vmatpush1.msra.mxu0 0.0
    %795 = vmatprep.subr.mxu0 0.0
    %796 = vmatpush1.msra.mxu0 0.0
    %797 = vmatprep.subr.mxu0 0.0
    %798 = vmatpush1.msra.mxu0 0.0
    %799 = vmatprep.subr.mxu0 0.0
    %800 = vmatpush1.msra.mxu0 0.0
    %801 = vmatprep.subr.mxu0 0.0
    %802 = vmatpush1.msra.mxu0 0.0
    %803 = vmatprep.subr.mxu0 0.0
    %804 = vmatpush1.msra.mxu0 0.0
    %805 = vmatprep.subr.mxu0 0.0
    %806 = vmatpush1.msra.mxu0 0.0
    %807 = vmatprep.subr.mxu0 0.0
    %808 = vmatpush1.msra.mxu0 0.0
    %809 = vmatprep.subr.mxu0 0.0
    %810 = vmatpush1.msra.mxu0 0.0
    %811 = vmatprep.subr.mxu0 0.0
    %812 = vmatpush1.msra.mxu0 0.0
    %813 = vmatprep.subr.mxu0 0.0
    %814 = vmatpush1.msra.mxu0 0.0
    %815 = vmatprep.subr.mxu0 0.0
    %816 = vmatpush1.msra.mxu0 0.0
    %817 = vmatprep.subr.mxu0 0.0
    %818 = vmatpush1.msra.mxu0 0.0
    %819 = vmatprep.subr.mxu0 0.0
    %820 = vmatpush1.msra.mxu0 0.0
    %821 = vmatprep.subr.mxu0 0.0
    %822 = vmatpush1.msra.mxu0 0.0
    %823 = vmatprep.subr.mxu0 0.0
    %824 = vmatpush1.msra.mxu0 0.0
    %825 = vmatprep.subr.mxu0 0.0
    %826 = vmatpush1.msra.mxu0 0.0
    %827 = vmatprep.subr.mxu0 0.0
    %828 = vmatpush1.msra.mxu0 0.0
    %829 = vmatprep.subr.mxu0 0.0
    %830 = vmatpush1.msra.mxu0 0.0
    %831 = vmatprep.subr.mxu0 0.0
    %832 = vmatpush1.msra.mxu0 0.0
    %833 = vmatprep.subr.mxu0 0.0
    %834 = vmatpush1.msra.mxu0 0.0
    %835 = vmatprep.subr.mxu0 0.0
    %836 = vmatpush1.msra.mxu0 0.0
    %837 = vmatprep.subr.mxu0 0.0
    %838 = vmatpush1.msra.mxu0 0.0
    %839 = vmatprep.subr.mxu0 0.0
    %840 = vmatpush1.msra.mxu0 0.0
    %841 = vmatprep.mubr.f32.mxu0 0.0
    %842 = vmatmul.mubr.f32.gmra.mrb[0].mxu0 %v692
    %v843 = vpop.f32.mrb[0].mxu0
    %v844 = vadd.f32 0.0, %v843
    %v845 = vpop.f32.mrb[0].mxu0
    %v846 = vadd.f32 0.0, %v845
    %847 = vdwg.mxu0
    %v848 = vadd.f32 %v653, %v773
    %v849 = vadd.f32 %v654, %v775
    %v850 = vadd.f32 %v655, %v844
    %v851 = vadd.f32 %v656, %v846
    %v852 = vlaneseq
    %v853 = vshrl.u32 %v852, 7
    %v854 = vsub.s32 4, %v853
    %v855 = vrot.slane %v55, %v854
    %v856 = vlaneseq
    %v857 = vshrl.u32 %v856, 7
    %v858 = vsub.s32 4, %v857
    %v859 = vrot.slane %v56, %v858
    %v860 = vlaneseq
    %v861 = vshrl.u32 %v860, 7
    %v862 = vsub.s32 4, %v861
    %v863 = vrot.slane %v57, %v862
    %v864 = vlaneseq
    %v865 = vshrl.u32 %v864, 7
    %v866 = vsub.s32 4, %v865
    %v867 = vrot.slane %v58, %v866
    %v868 = vmul.f32 %v46, %v855
    %v869 = vmul.f32 %v49, %v859
    %v870 = vmul.f32 %v47, %v863
    %v871 = vmul.f32 %v52, %v867
    %872 = vrot.lane.b32.xlu0 %v54, 112
    %v873 = vpop.permute.xlu0 %872
    %v874 = vsel %vm104, %v873, 0
    %v877 = vsel %vm108, %v868, 0
    %v880 = vsel %vm108, %v869, 0
    %v883 = vsel %vm108, %v870, 0
    %v886 = vsel %vm108, %v871, 0
    %888 = vmatprep.subr.mxu0 %v880
    %889 = vmatpush1.msra.mxu0 %v877
    %890 = vmatprep.subr.mxu0 0.0
    %891 = vmatpush1.msra.mxu0 0.0
    %892 = vmatprep.subr.mxu0 0.0
    %893 = vmatpush1.msra.mxu0 0.0
    %894 = vmatprep.subr.mxu0 0.0
    %895 = vmatpush1.msra.mxu0 0.0
    %896 = vmatprep.subr.mxu0 0.0
    %897 = vmatpush1.msra.mxu0 0.0
    %898 = vmatprep.subr.mxu0 0.0
    %899 = vmatpush1.msra.mxu0 0.0
    %900 = vmatprep.subr.mxu0 0.0
    %901 = vmatpush1.msra.mxu0 0.0
    %902 = vmatprep.subr.mxu0 0.0
    %903 = vmatpush1.msra.mxu0 0.0
    %904 = vmatprep.subr.mxu0 0.0
    %905 = vmatpush1.msra.mxu0 0.0
    %906 = vmatprep.subr.mxu0 0.0
    %907 = vmatpush1.msra.mxu0 0.0
    %908 = vmatprep.subr.mxu0 0.0
    %909 = vmatpush1.msra.mxu0 0.0
    %910 = vmatprep.subr.mxu0 0.0
    %911 = vmatpush1.msra.mxu0 0.0
    %912 = vmatprep.subr.mxu0 0.0
    %913 = vmatpush1.msra.mxu0 0.0
    %914 = vmatprep.subr.mxu0 0.0
    %915 = vmatpush1.msra.mxu0 0.0
    %916 = vmatprep.subr.mxu0 0.0
    %917 = vmatpush1.msra.mxu0 0.0
    %918 = vmatprep.subr.mxu0 0.0
    %919 = vmatpush1.msra.mxu0 0.0
    %920 = vmatprep.subr.mxu0 0.0
    %921 = vmatpush1.msra.mxu0 0.0
    %922 = vmatprep.subr.mxu0 0.0
    %923 = vmatpush1.msra.mxu0 0.0
    %924 = vmatprep.subr.mxu0 0.0
    %925 = vmatpush1.msra.mxu0 0.0
    %926 = vmatprep.subr.mxu0 0.0
    %927 = vmatpush1.msra.mxu0 0.0
    %928 = vmatprep.subr.mxu0 0.0
    %929 = vmatpush1.msra.mxu0 0.0
    %930 = vmatprep.subr.mxu0 0.0
    %931 = vmatpush1.msra.mxu0 0.0
    %932 = vmatprep.subr.mxu0 0.0
    %933 = vmatpush1.msra.mxu0 0.0
    %934 = vmatprep.subr.mxu0 0.0
    %935 = vmatpush1.msra.mxu0 0.0
    %936 = vmatprep.subr.mxu0 0.0
    %937 = vmatpush1.msra.mxu0 0.0
    %938 = vmatprep.subr.mxu0 0.0
    %939 = vmatpush1.msra.mxu0 0.0
    %940 = vmatprep.subr.mxu0 0.0
    %941 = vmatpush1.msra.mxu0 0.0
    %942 = vmatprep.subr.mxu0 0.0
    %943 = vmatpush1.msra.mxu0 0.0
    %944 = vmatprep.subr.mxu0 0.0
    %945 = vmatpush1.msra.mxu0 0.0
    %946 = vmatprep.subr.mxu0 0.0
    %947 = vmatpush1.msra.mxu0 0.0
    %948 = vmatprep.subr.mxu0 0.0
    %949 = vmatpush1.msra.mxu0 0.0
    %950 = vmatprep.subr.mxu0 0.0
    %951 = vmatpush1.msra.mxu0 0.0
    %952 = vmatprep.mubr.f32.mxu0 0.0
    %953 = vmatmul.mubr.f32.gmra.mrb[0].mxu0 %v874
    %v954 = vpop.f32.mrb[0].mxu0
    %v955 = vadd.f32 0.0, %v954
    %v956 = vpop.f32.mrb[0].mxu0
    %v957 = vadd.f32 0.0, %v956
    %958 = vdwg.mxu0
    %959 = vmatprep.subr.mxu0 %v886
    %960 = vmatpush1.msra.mxu0 %v883
    %961 = vmatprep.subr.mxu0 0.0
    %962 = vmatpush1.msra.mxu0 0.0
    %963 = vmatprep.subr.mxu0 0.0
    %964 = vmatpush1.msra.mxu0 0.0
    %965 = vmatprep.subr.mxu0 0.0
    %966 = vmatpush1.msra.mxu0 0.0
    %967 = vmatprep.subr.mxu0 0.0
    %968 = vmatpush1.msra.mxu0 0.0
    %969 = vmatprep.subr.mxu0 0.0
    %970 = vmatpush1.msra.mxu0 0.0
    %971 = vmatprep.subr.mxu0 0.0
    %972 = vmatpush1.msra.mxu0 0.0
    %973 = vmatprep.subr.mxu0 0.0
    %974 = vmatpush1.msra.mxu0 0.0
    %975 = vmatprep.subr.mxu0 0.0
    %976 = vmatpush1.msra.mxu0 0.0
    %977 = vmatprep.subr.mxu0 0.0
    %978 = vmatpush1.msra.mxu0 0.0
    %979 = vmatprep.subr.mxu0 0.0
    %980 = vmatpush1.msra.mxu0 0.0
    %981 = vmatprep.subr.mxu0 0.0
    %982 = vmatpush1.msra.mxu0 0.0
    %983 = vmatprep.subr.mxu0 0.0
    %984 = vmatpush1.msra.mxu0 0.0
    %985 = vmatprep.subr.mxu0 0.0
    %986 = vmatpush1.msra.mxu0 0.0
    %987 = vmatprep.subr.mxu0 0.0
    %988 = vmatpush1.msra.mxu0 0.0
    %989 = vmatprep.subr.mxu0 0.0
    %990 = vmatpush1.msra.mxu0 0.0
    %991 = vmatprep.subr.mxu0 0.0
    %992 = vmatpush1.msra.mxu0 0.0
    %993 = vmatprep.subr.mxu0 0.0
    %994 = vmatpush1.msra.mxu0 0.0
    %995 = vmatprep.subr.mxu0 0.0
    %996 = vmatpush1.msra.mxu0 0.0
    %997 = vmatprep.subr.mxu0 0.0
    %998 = vmatpush1.msra.mxu0 0.0
    %999 = vmatprep.subr.mxu0 0.0
    %1000 = vmatpush1.msra.mxu0 0.0
    %1001 = vmatprep.subr.mxu0 0.0
    %1002 = vmatpush1.msra.mxu0 0.0
    %1003 = vmatprep.subr.mxu0 0.0
    %1004 = vmatpush1.msra.mxu0 0.0
    %1005 = vmatprep.subr.mxu0 0.0
    %1006 = vmatpush1.msra.mxu0 0.0
    %1007 = vmatprep.subr.mxu0 0.0
    %1008 = vmatpush1.msra.mxu0 0.0
    %1009 = vmatprep.subr.mxu0 0.0
    %1010 = vmatpush1.msra.mxu0 0.0
    %1011 = vmatprep.subr.mxu0 0.0
    %1012 = vmatpush1.msra.mxu0 0.0
    %1013 = vmatprep.subr.mxu0 0.0
    %1014 = vmatpush1.msra.mxu0 0.0
    %1015 = vmatprep.subr.mxu0 0.0
    %1016 = vmatpush1.msra.mxu0 0.0
    %1017 = vmatprep.subr.mxu0 0.0
    %1018 = vmatpush1.msra.mxu0 0.0
    %1019 = vmatprep.subr.mxu0 0.0
    %1020 = vmatpush1.msra.mxu0 0.0
    %1021 = vmatprep.subr.mxu0 0.0
    %1022 = vmatpush1.msra.mxu0 0.0
    %1023 = vmatprep.mubr.f32.mxu0 0.0
    %1024 = vmatmul.mubr.f32.gmra.mrb[0].mxu0 %v874
    %v1025 = vpop.f32.mrb[0].mxu0
    %v1026 = vadd.f32 0.0, %v1025
    %v1027 = vpop.f32.mrb[0].mxu0
    %v1028 = vadd.f32 0.0, %v1027
    %1029 = vdwg.mxu0
    %v1030 = vadd.f32 %v848, %v955
    %v1031 = vadd.f32 %v849, %v957
    %v1032 = vadd.f32 %v850, %v1026
    %v1033 = vadd.f32 %v851, %v1028
    %1034 = vrot.lane.b32.xlu0 %v46, 127
    %v1035 = vpop.permute.xlu0 %1034
    %1036 = vrot.lane.b32.xlu0 %v49, 127
    %v1037 = vpop.permute.xlu0 %1036
    %1038 = vrot.lane.b32.xlu0 %v47, 127
    %v1039 = vpop.permute.xlu0 %1038
    %1040 = vrot.lane.b32.xlu0 %v52, 127
    %v1041 = vpop.permute.xlu0 %1040
    %vm1042 = vcmp.lt.s32.totalorder %v78, 127
    %v1043 = vsel %vm1042, %v1039, %v1041
    %v1044 = vsel %vm1042, %v1037, %v1039
    %v1045 = vsel %vm1042, %v1035, %v1037
    %v1046 = vsel %vm1042, %v1041, %v1035
    %v1047 = vlaneseq
    %v1048 = vshrl.u32 %v1047, 7
    %v1049 = vsub.s32 5, %v1048
    %v1050 = vrot.slane %v55, %v1049
    %v1051 = vlaneseq
    %v1052 = vshrl.u32 %v1051, 7
    %v1053 = vsub.s32 5, %v1052
    %v1054 = vrot.slane %v56, %v1053
    %v1055 = vlaneseq
    %v1056 = vshrl.u32 %v1055, 7
    %v1057 = vsub.s32 5, %v1056
    %v1058 = vrot.slane %v57, %v1057
    %v1059 = vlaneseq
    %v1060 = vshrl.u32 %v1059, 7
    %v1061 = vsub.s32 5, %v1060
    %v1062 = vrot.slane %v58, %v1061
    %v1063 = vmul.f32 %v1045, %v1050
    %v1064 = vmul.f32 %v1044, %v1054
    %v1065 = vmul.f32 %v1043, %v1058
    %v1066 = vmul.f32 %v1046, %v1062
    %1067 = vrot.lane.b32.xlu0 %v54, 108
    %v1068 = vpop.permute.xlu0 %1067
    %v1069 = vsel %vm104, %v1068, 0
    %v1072 = vsel %vm108, %v1063, 0
    %v1075 = vsel %vm108, %v1064, 0
    %v1078 = vsel %vm108, %v1065, 0
    %v1081 = vsel %vm108, %v1066, 0
    %1083 = vmatprep.subr.mxu0 %v1075
    %1084 = vmatpush1.msra.mxu0 %v1072
    %1085 = vmatprep.subr.mxu0 0.0
    %1086 = vmatpush1.msra.mxu0 0.0
    %1087 = vmatprep.subr.mxu0 0.0
    %1088 = vmatpush1.msra.mxu0 0.0
    %1089 = vmatprep.subr.mxu0 0.0
    %1090 = vmatpush1.msra.mxu0 0.0
    %1091 = vmatprep.subr.mxu0 0.0
    %1092 = vmatpush1.msra.mxu0 0.0
    %1093 = vmatprep.subr.mxu0 0.0
    %1094 = vmatpush1.msra.mxu0 0.0
    %1095 = vmatprep.subr.mxu0 0.0
    %1096 = vmatpush1.msra.mxu0 0.0
    %1097 = vmatprep.subr.mxu0 0.0
    %1098 = vmatpush1.msra.mxu0 0.0
    %1099 = vmatprep.subr.mxu0 0.0
    %1100 = vmatpush1.msra.mxu0 0.0
    %1101 = vmatprep.subr.mxu0 0.0
    %1102 = vmatpush1.msra.mxu0 0.0
    %1103 = vmatprep.subr.mxu0 0.0
    %1104 = vmatpush1.msra.mxu0 0.0
    %1105 = vmatprep.subr.mxu0 0.0
    %1106 = vmatpush1.msra.mxu0 0.0
    %1107 = vmatprep.subr.mxu0 0.0
    %1108 = vmatpush1.msra.mxu0 0.0
    %1109 = vmatprep.subr.mxu0 0.0
    %1110 = vmatpush1.msra.mxu0 0.0
    %1111 = vmatprep.subr.mxu0 0.0
    %1112 = vmatpush1.msra.mxu0 0.0
    %1113 = vmatprep.subr.mxu0 0.0
    %1114 = vmatpush1.msra.mxu0 0.0
    %1115 = vmatprep.subr.mxu0 0.0
    %1116 = vmatpush1.msra.mxu0 0.0
    %1117 = vmatprep.subr.mxu0 0.0
    %1118 = vmatpush1.msra.mxu0 0.0
    %1119 = vmatprep.subr.mxu0 0.0
    %1120 = vmatpush1.msra.mxu0 0.0
    %1121 = vmatprep.subr.mxu0 0.0
    %1122 = vmatpush1.msra.mxu0 0.0
    %1123 = vmatprep.subr.mxu0 0.0
    %1124 = vmatpush1.msra.mxu0 0.0
    %1125 = vmatprep.subr.mxu0 0.0
    %1126 = vmatpush1.msra.mxu0 0.0
    %1127 = vmatprep.subr.mxu0 0.0
    %1128 = vmatpush1.msra.mxu0 0.0
    %1129 = vmatprep.subr.mxu0 0.0
    %1130 = vmatpush1.msra.mxu0 0.0
    %1131 = vmatprep.subr.mxu0 0.0
    %1132 = vmatpush1.msra.mxu0 0.0
    %1133 = vmatprep.subr.mxu0 0.0
    %1134 = vmatpush1.msra.mxu0 0.0
    %1135 = vmatprep.subr.mxu0 0.0
    %1136 = vmatpush1.msra.mxu0 0.0
    %1137 = vmatprep.subr.mxu0 0.0
    %1138 = vmatpush1.msra.mxu0 0.0
    %1139 = vmatprep.subr.mxu0 0.0
    %1140 = vmatpush1.msra.mxu0 0.0
    %1141 = vmatprep.subr.mxu0 0.0
    %1142 = vmatpush1.msra.mxu0 0.0
    %1143 = vmatprep.subr.mxu0 0.0
    %1144 = vmatpush1.msra.mxu0 0.0
    %1145 = vmatprep.subr.mxu0 0.0
    %1146 = vmatpush1.msra.mxu0 0.0
    %1147 = vmatprep.mubr.f32.mxu0 0.0
    %1148 = vmatmul.mubr.f32.gmra.mrb[0].mxu0 %v1069
    %v1149 = vpop.f32.mrb[0].mxu0
    %v1150 = vadd.f32 0.0, %v1149
    %v1151 = vpop.f32.mrb[0].mxu0
    %v1152 = vadd.f32 0.0, %v1151
    %1153 = vdwg.mxu0
    %1154 = vmatprep.subr.mxu0 %v1081
    %1155 = vmatpush1.msra.mxu0 %v1078
    %1156 = vmatprep.subr.mxu0 0.0
    %1157 = vmatpush1.msra.mxu0 0.0
    %1158 = vmatprep.subr.mxu0 0.0
    %1159 = vmatpush1.msra.mxu0 0.0
    %1160 = vmatprep.subr.mxu0 0.0
    %1161 = vmatpush1.msra.mxu0 0.0
    %1162 = vmatprep.subr.mxu0 0.0
    %1163 = vmatpush1.msra.mxu0 0.0
    %1164 = vmatprep.subr.mxu0 0.0
    %1165 = vmatpush1.msra.mxu0 0.0
    %1166 = vmatprep.subr.mxu0 0.0
    %1167 = vmatpush1.msra.mxu0 0.0
    %1168 = vmatprep.subr.mxu0 0.0
    %1169 = vmatpush1.msra.mxu0 0.0
    %1170 = vmatprep.subr.mxu0 0.0
    %1171 = vmatpush1.msra.mxu0 0.0
    %1172 = vmatprep.subr.mxu0 0.0
    %1173 = vmatpush1.msra.mxu0 0.0
    %1174 = vmatprep.subr.mxu0 0.0
    %1175 = vmatpush1.msra.mxu0 0.0
    %1176 = vmatprep.subr.mxu0 0.0
    %1177 = vmatpush1.msra.mxu0 0.0
    %1178 = vmatprep.subr.mxu0 0.0
    %1179 = vmatpush1.msra.mxu0 0.0
    %1180 = vmatprep.subr.mxu0 0.0
    %1181 = vmatpush1.msra.mxu0 0.0
    %1182 = vmatprep.subr.mxu0 0.0
    %1183 = vmatpush1.msra.mxu0 0.0
    %1184 = vmatprep.subr.mxu0 0.0
    %1185 = vmatpush1.msra.mxu0 0.0
    %1186 = vmatprep.subr.mxu0 0.0
    %1187 = vmatpush1.msra.mxu0 0.0
    %1188 = vmatprep.subr.mxu0 0.0
    %1189 = vmatpush1.msra.mxu0 0.0
    %1190 = vmatprep.subr.mxu0 0.0
    %1191 = vmatpush1.msra.mxu0 0.0
    %1192 = vmatprep.subr.mxu0 0.0
    %1193 = vmatpush1.msra.mxu0 0.0
    %1194 = vmatprep.subr.mxu0 0.0
    %1195 = vmatpush1.msra.mxu0 0.0
    %1196 = vmatprep.subr.mxu0 0.0
    %1197 = vmatpush1.msra.mxu0 0.0
    %1198 = vmatprep.subr.mxu0 0.0
    %1199 = vmatpush1.msra.mxu0 0.0
    %1200 = vmatprep.subr.mxu0 0.0
    %1201 = vmatpush1.msra.mxu0 0.0
    %1202 = vmatprep.subr.mxu0 0.0
    %1203 = vmatpush1.msra.mxu0 0.0
    %1204 = vmatprep.subr.mxu0 0.0
    %1205 = vmatpush1.msra.mxu0 0.0
    %1206 = vmatprep.subr.mxu0 0.0
    %1207 = vmatpush1.msra.mxu0 0.0
    %1208 = vmatprep.subr.mxu0 0.0
    %1209 = vmatpush1.msra.mxu0 0.0
    %1210 = vmatprep.subr.mxu0 0.0
    %1211 = vmatpush1.msra.mxu0 0.0
    %1212 = vmatprep.subr.mxu0 0.0
    %1213 = vmatpush1.msra.mxu0 0.0
    %1214 = vmatprep.subr.mxu0 0.0
    %1215 = vmatpush1.msra.mxu0 0.0
    %1216 = vmatprep.subr.mxu0 0.0
    %1217 = vmatpush1.msra.mxu0 0.0
    %1218 = vmatprep.mubr.f32.mxu0 0.0
    %1219 = vmatmul.mubr.f32.gmra.mrb[0].mxu0 %v1069
    %v1220 = vpop.f32.mrb[0].mxu0
    %v1221 = vadd.f32 0.0, %v1220
    %v1222 = vpop.f32.mrb[0].mxu0
    %v1223 = vadd.f32 0.0, %v1222
    %1224 = vdwg.mxu0
    %v1225 = vadd.f32 %v1030, %v1150
    %v1226 = vadd.f32 %v1031, %v1152
    %v1227 = vadd.f32 %v1032, %v1221
    %v1228 = vadd.f32 %v1033, %v1223
    %1229 = vrot.lane.b32.xlu0 %v46, 113
    %v1230 = vpop.permute.xlu0 %1229
    %1231 = vrot.lane.b32.xlu0 %v49, 113
    %v1232 = vpop.permute.xlu0 %1231
    %1233 = vrot.lane.b32.xlu0 %v47, 113
    %v1234 = vpop.permute.xlu0 %1233
    %1235 = vrot.lane.b32.xlu0 %v52, 113
    %v1236 = vpop.permute.xlu0 %1235
    %vm1237 = vcmp.lt.s32.totalorder %v78, 113
    %v1238 = vsel %vm1237, %v1234, %v1236
    %v1239 = vsel %vm1237, %v1232, %v1234
    %v1240 = vsel %vm1237, %v1230, %v1232
    %v1241 = vsel %vm1237, %v1236, %v1230
    %v1242 = vlaneseq
    %v1243 = vshrl.u32 %v1242, 7
    %v1244 = vsub.s32 6, %v1243
    %v1245 = vrot.slane %v55, %v1244
    %v1246 = vlaneseq
    %v1247 = vshrl.u32 %v1246, 7
    %v1248 = vsub.s32 6, %v1247
    %v1249 = vrot.slane %v56, %v1248
    %v1250 = vlaneseq
    %v1251 = vshrl.u32 %v1250, 7
    %v1252 = vsub.s32 6, %v1251
    %v1253 = vrot.slane %v57, %v1252
    %v1254 = vlaneseq
    %v1255 = vshrl.u32 %v1254, 7
    %v1256 = vsub.s32 6, %v1255
    %v1257 = vrot.slane %v58, %v1256
    %v1258 = vmul.f32 %v1240, %v1245
    %v1259 = vmul.f32 %v1239, %v1249
    %v1260 = vmul.f32 %v1238, %v1253
    %v1261 = vmul.f32 %v1241, %v1257
    %1262 = vrot.lane.b32.xlu0 %v54, 104
    %v1263 = vpop.permute.xlu0 %1262
    %v1264 = vsel %vm104, %v1263, 0
    %v1267 = vsel %vm108, %v1258, 0
    %v1270 = vsel %vm108, %v1259, 0
    %v1273 = vsel %vm108, %v1260, 0
    %v1276 = vsel %vm108, %v1261, 0
    %1278 = vmatprep.subr.mxu0 %v1270
    %1279 = vmatpush1.msra.mxu0 %v1267
    %1280 = vmatprep.subr.mxu0 0.0
    %1281 = vmatpush1.msra.mxu0 0.0
    %1282 = vmatprep.subr.mxu0 0.0
    %1283 = vmatpush1.msra.mxu0 0.0
    %1284 = vmatprep.subr.mxu0 0.0
    %1285 = vmatpush1.msra.mxu0 0.0
    %1286 = vmatprep.subr.mxu0 0.0
    %1287 = vmatpush1.msra.mxu0 0.0
    %1288 = vmatprep.subr.mxu0 0.0
    %1289 = vmatpush1.msra.mxu0 0.0
    %1290 = vmatprep.subr.mxu0 0.0
    %1291 = vmatpush1.msra.mxu0 0.0
    %1292 = vmatprep.subr.mxu0 0.0
    %1293 = vmatpush1.msra.mxu0 0.0
    %1294 = vmatprep.subr.mxu0 0.0
    %1295 = vmatpush1.msra.mxu0 0.0
    %1296 = vmatprep.subr.mxu0 0.0
    %1297 = vmatpush1.msra.mxu0 0.0
    %1298 = vmatprep.subr.mxu0 0.0
    %1299 = vmatpush1.msra.mxu0 0.0
    %1300 = vmatprep.subr.mxu0 0.0
    %1301 = vmatpush1.msra.mxu0 0.0
    %1302 = vmatprep.subr.mxu0 0.0
    %1303 = vmatpush1.msra.mxu0 0.0
    %1304 = vmatprep.subr.mxu0 0.0
    %1305 = vmatpush1.msra.mxu0 0.0
    %1306 = vmatprep.subr.mxu0 0.0
    %1307 = vmatpush1.msra.mxu0 0.0
    %1308 = vmatprep.subr.mxu0 0.0
    %1309 = vmatpush1.msra.mxu0 0.0
    %1310 = vmatprep.subr.mxu0 0.0
    %1311 = vmatpush1.msra.mxu0 0.0
    %1312 = vmatprep.subr.mxu0 0.0
    %1313 = vmatpush1.msra.mxu0 0.0
    %1314 = vmatprep.subr.mxu0 0.0
    %1315 = vmatpush1.msra.mxu0 0.0
    %1316 = vmatprep.subr.mxu0 0.0
    %1317 = vmatpush1.msra.mxu0 0.0
    %1318 = vmatprep.subr.mxu0 0.0
    %1319 = vmatpush1.msra.mxu0 0.0
    %1320 = vmatprep.subr.mxu0 0.0
    %1321 = vmatpush1.msra.mxu0 0.0
    %1322 = vmatprep.subr.mxu0 0.0
    %1323 = vmatpush1.msra.mxu0 0.0
    %1324 = vmatprep.subr.mxu0 0.0
    %1325 = vmatpush1.msra.mxu0 0.0
    %1326 = vmatprep.subr.mxu0 0.0
    %1327 = vmatpush1.msra.mxu0 0.0
    %1328 = vmatprep.subr.mxu0 0.0
    %1329 = vmatpush1.msra.mxu0 0.0
    %1330 = vmatprep.subr.mxu0 0.0
    %1331 = vmatpush1.msra.mxu0 0.0
    %1332 = vmatprep.subr.mxu0 0.0
    %1333 = vmatpush1.msra.mxu0 0.0
    %1334 = vmatprep.subr.mxu0 0.0
    %1335 = vmatpush1.msra.mxu0 0.0
    %1336 = vmatprep.subr.mxu0 0.0
    %1337 = vmatpush1.msra.mxu0 0.0
    %1338 = vmatprep.subr.mxu0 0.0
    %1339 = vmatpush1.msra.mxu0 0.0
    %1340 = vmatprep.subr.mxu0 0.0
    %1341 = vmatpush1.msra.mxu0 0.0
    %1342 = vmatprep.mubr.f32.mxu0 0.0
    %1343 = vmatmul.mubr.f32.gmra.mrb[0].mxu0 %v1264
    %v1344 = vpop.f32.mrb[0].mxu0
    %v1345 = vadd.f32 0.0, %v1344
    %v1346 = vpop.f32.mrb[0].mxu0
    %v1347 = vadd.f32 0.0, %v1346
    %1348 = vdwg.mxu0
    %1349 = vmatprep.subr.mxu0 %v1276
    %1350 = vmatpush1.msra.mxu0 %v1273
    %1351 = vmatprep.subr.mxu0 0.0
    %1352 = vmatpush1.msra.mxu0 0.0
    %1353 = vmatprep.subr.mxu0 0.0
    %1354 = vmatpush1.msra.mxu0 0.0
    %1355 = vmatprep.subr.mxu0 0.0
    %1356 = vmatpush1.msra.mxu0 0.0
    %1357 = vmatprep.subr.mxu0 0.0
    %1358 = vmatpush1.msra.mxu0 0.0
    %1359 = vmatprep.subr.mxu0 0.0
    %1360 = vmatpush1.msra.mxu0 0.0
    %1361 = vmatprep.subr.mxu0 0.0
    %1362 = vmatpush1.msra.mxu0 0.0
    %1363 = vmatprep.subr.mxu0 0.0
    %1364 = vmatpush1.msra.mxu0 0.0
    %1365 = vmatprep.subr.mxu0 0.0
    %1366 = vmatpush1.msra.mxu0 0.0
    %1367 = vmatprep.subr.mxu0 0.0
    %1368 = vmatpush1.msra.mxu0 0.0
    %1369 = vmatprep.subr.mxu0 0.0
    %1370 = vmatpush1.msra.mxu0 0.0
    %1371 = vmatprep.subr.mxu0 0.0
    %1372 = vmatpush1.msra.mxu0 0.0
    %1373 = vmatprep.subr.mxu0 0.0
    %1374 = vmatpush1.msra.mxu0 0.0
    %1375 = vmatprep.subr.mxu0 0.0
    %1376 = vmatpush1.msra.mxu0 0.0
    %1377 = vmatprep.subr.mxu0 0.0
    %1378 = vmatpush1.msra.mxu0 0.0
    %1379 = vmatprep.subr.mxu0 0.0
    %1380 = vmatpush1.msra.mxu0 0.0
    %1381 = vmatprep.subr.mxu0 0.0
    %1382 = vmatpush1.msra.mxu0 0.0
    %1383 = vmatprep.subr.mxu0 0.0
    %1384 = vmatpush1.msra.mxu0 0.0
    %1385 = vmatprep.subr.mxu0 0.0
    %1386 = vmatpush1.msra.mxu0 0.0
    %1387 = vmatprep.subr.mxu0 0.0
    %1388 = vmatpush1.msra.mxu0 0.0
    %1389 = vmatprep.subr.mxu0 0.0
    %1390 = vmatpush1.msra.mxu0 0.0
    %1391 = vmatprep.subr.mxu0 0.0
    %1392 = vmatpush1.msra.mxu0 0.0
    %1393 = vmatprep.subr.mxu0 0.0
    %1394 = vmatpush1.msra.mxu0 0.0
    %1395 = vmatprep.subr.mxu0 0.0
    %1396 = vmatpush1.msra.mxu0 0.0
    %1397 = vmatprep.subr.mxu0 0.0
    %1398 = vmatpush1.msra.mxu0 0.0
    %1399 = vmatprep.subr.mxu0 0.0
    %1400 = vmatpush1.msra.mxu0 0.0
    %1401 = vmatprep.subr.mxu0 0.0
    %1402 = vmatpush1.msra.mxu0 0.0
    %1403 = vmatprep.subr.mxu0 0.0
    %1404 = vmatpush1.msra.mxu0 0.0
    %1405 = vmatprep.subr.mxu0 0.0
    %1406 = vmatpush1.msra.mxu0 0.0
    %1407 = vmatprep.subr.mxu0 0.0
    %1408 = vmatpush1.msra.mxu0 0.0
    %1409 = vmatprep.subr.mxu0 0.0
    %1410 = vmatpush1.msra.mxu0 0.0
    %1411 = vmatprep.subr.mxu0 0.0
    %1412 = vmatpush1.msra.mxu0 0.0
    %1413 = vmatprep.mubr.f32.mxu0 0.0
    %1414 = vmatmul.mubr.f32.gmra.mrb[0].mxu0 %v1264
    %v1415 = vpop.f32.mrb[0].mxu0
    %v1416 = vadd.f32 0.0, %v1415
    %v1417 = vpop.f32.mrb[0].mxu0
    %v1418 = vadd.f32 0.0, %v1417
    %1419 = vdwg.mxu0
    %v1420 = vadd.f32 %v1225, %v1345
    %v1421 = vadd.f32 %v1226, %v1347
    %v1422 = vadd.f32 %v1227, %v1416
    %v1423 = vadd.f32 %v1228, %v1418
    %1424 = vrot.lane.b32.xlu0 %v46, 112
    %v1425 = vpop.permute.xlu0 %1424
    %1426 = vrot.lane.b32.xlu0 %v49, 112
    %v1427 = vpop.permute.xlu0 %1426
    %1428 = vrot.lane.b32.xlu0 %v47, 112
    %v1429 = vpop.permute.xlu0 %1428
    %1430 = vrot.lane.b32.xlu0 %v52, 112
    %v1431 = vpop.permute.xlu0 %1430
    %vm1432 = vcmp.lt.s32.totalorder %v78, 112
    %v1433 = vsel %vm1432, %v1429, %v1431
    %v1434 = vsel %vm1432, %v1427, %v1429
    %v1435 = vsel %vm1432, %v1425, %v1427
    %v1436 = vsel %vm1432, %v1431, %v1425
    %v1437 = vlaneseq
    %v1438 = vshrl.u32 %v1437, 7
    %v1439 = vsub.s32 7, %v1438
    %v1440 = vrot.slane %v55, %v1439
    %v1441 = vlaneseq
    %v1442 = vshrl.u32 %v1441, 7
    %v1443 = vsub.s32 7, %v1442
    %v1444 = vrot.slane %v56, %v1443
    %v1445 = vlaneseq
    %v1446 = vshrl.u32 %v1445, 7
    %v1447 = vsub.s32 7, %v1446
    %v1448 = vrot.slane %v57, %v1447
    %v1449 = vlaneseq
    %v1450 = vshrl.u32 %v1449, 7
    %v1451 = vsub.s32 7, %v1450
    %v1452 = vrot.slane %v58, %v1451
    %v1453 = vmul.f32 %v1435, %v1440
    %v1454 = vmul.f32 %v1434, %v1444
    %v1455 = vmul.f32 %v1433, %v1448
    %v1456 = vmul.f32 %v1436, %v1452
    %1457 = vrot.lane.b32.xlu0 %v54, 100
    %v1458 = vpop.permute.xlu0 %1457
    %v1459 = vsel %vm104, %v1458, 0
    %v1462 = vsel %vm108, %v1453, 0
    %v1465 = vsel %vm108, %v1454, 0
    %v1468 = vsel %vm108, %v1455, 0
    %v1471 = vsel %vm108, %v1456, 0
    %1473 = vmatprep.subr.mxu0 %v1465
    %1474 = vmatpush1.msra.mxu0 %v1462
    %1475 = vmatprep.subr.mxu0 0.0
    %1476 = vmatpush1.msra.mxu0 0.0
    %1477 = vmatprep.subr.mxu0 0.0
    %1478 = vmatpush1.msra.mxu0 0.0
    %1479 = vmatprep.subr.mxu0 0.0
    %1480 = vmatpush1.msra.mxu0 0.0
    %1481 = vmatprep.subr.mxu0 0.0
    %1482 = vmatpush1.msra.mxu0 0.0
    %1483 = vmatprep.subr.mxu0 0.0
    %1484 = vmatpush1.msra.mxu0 0.0
    %1485 = vmatprep.subr.mxu0 0.0
    %1486 = vmatpush1.msra.mxu0 0.0
    %1487 = vmatprep.subr.mxu0 0.0
    %1488 = vmatpush1.msra.mxu0 0.0
    %1489 = vmatprep.subr.mxu0 0.0
    %1490 = vmatpush1.msra.mxu0 0.0
    %1491 = vmatprep.subr.mxu0 0.0
    %1492 = vmatpush1.msra.mxu0 0.0
    %1493 = vmatprep.subr.mxu0 0.0
    %1494 = vmatpush1.msra.mxu0 0.0
    %1495 = vmatprep.subr.mxu0 0.0
    %1496 = vmatpush1.msra.mxu0 0.0
    %1497 = vmatprep.subr.mxu0 0.0
    %1498 = vmatpush1.msra.mxu0 0.0
    %1499 = vmatprep.subr.mxu0 0.0
    %1500 = vmatpush1.msra.mxu0 0.0
    %1501 = vmatprep.subr.mxu0 0.0
    %1502 = vmatpush1.msra.mxu0 0.0
    %1503 = vmatprep.subr.mxu0 0.0
    %1504 = vmatpush1.msra.mxu0 0.0
    %1505 = vmatprep.subr.mxu0 0.0
    %1506 = vmatpush1.msra.mxu0 0.0
    %1507 = vmatprep.subr.mxu0 0.0
    %1508 = vmatpush1.msra.mxu0 0.0
    %1509 = vmatprep.subr.mxu0 0.0
    %1510 = vmatpush1.msra.mxu0 0.0
    %1511 = vmatprep.subr.mxu0 0.0
    %1512 = vmatpush1.msra.mxu0 0.0
    %1513 = vmatprep.subr.mxu0 0.0
    %1514 = vmatpush1.msra.mxu0 0.0
    %1515 = vmatprep.subr.mxu0 0.0
    %1516 = vmatpush1.msra.mxu0 0.0
    %1517 = vmatprep.subr.mxu0 0.0
    %1518 = vmatpush1.msra.mxu0 0.0
    %1519 = vmatprep.subr.mxu0 0.0
    %1520 = vmatpush1.msra.mxu0 0.0
    %1521 = vmatprep.subr.mxu0 0.0
    %1522 = vmatpush1.msra.mxu0 0.0
    %1523 = vmatprep.subr.mxu0 0.0
    %1524 = vmatpush1.msra.mxu0 0.0
    %1525 = vmatprep.subr.mxu0 0.0
    %1526 = vmatpush1.msra.mxu0 0.0
    %1527 = vmatprep.subr.mxu0 0.0
    %1528 = vmatpush1.msra.mxu0 0.0
    %1529 = vmatprep.subr.mxu0 0.0
    %1530 = vmatpush1.msra.mxu0 0.0
    %1531 = vmatprep.subr.mxu0 0.0
    %1532 = vmatpush1.msra.mxu0 0.0
    %1533 = vmatprep.subr.mxu0 0.0
    %1534 = vmatpush1.msra.mxu0 0.0
    %1535 = vmatprep.subr.mxu0 0.0
    %1536 = vmatpush1.msra.mxu0 0.0
    %1537 = vmatprep.mubr.f32.mxu0 0.0
    %1538 = vmatmul.mubr.f32.gmra.mrb[0].mxu0 %v1459
    %v1539 = vpop.f32.mrb[0].mxu0
    %v1540 = vadd.f32 0.0, %v1539
    %v1541 = vpop.f32.mrb[0].mxu0
    %v1542 = vadd.f32 0.0, %v1541
    %1543 = vdwg.mxu0
    %1544 = vmatprep.subr.mxu0 %v1471
    %1545 = vmatpush1.msra.mxu0 %v1468
    %1546 = vmatprep.subr.mxu0 0.0
    %1547 = vmatpush1.msra.mxu0 0.0
    %1548 = vmatprep.subr.mxu0 0.0
    %1549 = vmatpush1.msra.mxu0 0.0
    %1550 = vmatprep.subr.mxu0 0.0
    %1551 = vmatpush1.msra.mxu0 0.0
    %1552 = vmatprep.subr.mxu0 0.0
    %1553 = vmatpush1.msra.mxu0 0.0
    %1554 = vmatprep.subr.mxu0 0.0
    %1555 = vmatpush1.msra.mxu0 0.0
    %1556 = vmatprep.subr.mxu0 0.0
    %1557 = vmatpush1.msra.mxu0 0.0
    %1558 = vmatprep.subr.mxu0 0.0
    %1559 = vmatpush1.msra.mxu0 0.0
    %1560 = vmatprep.subr.mxu0 0.0
    %1561 = vmatpush1.msra.mxu0 0.0
    %1562 = vmatprep.subr.mxu0 0.0
    %1563 = vmatpush1.msra.mxu0 0.0
    %1564 = vmatprep.subr.mxu0 0.0
    %1565 = vmatpush1.msra.mxu0 0.0
    %1566 = vmatprep.subr.mxu0 0.0
    %1567 = vmatpush1.msra.mxu0 0.0
    %1568 = vmatprep.subr.mxu0 0.0
    %1569 = vmatpush1.msra.mxu0 0.0
    %1570 = vmatprep.subr.mxu0 0.0
    %1571 = vmatpush1.msra.mxu0 0.0
    %1572 = vmatprep.subr.mxu0 0.0
    %1573 = vmatpush1.msra.mxu0 0.0
    %1574 = vmatprep.subr.mxu0 0.0
    %1575 = vmatpush1.msra.mxu0 0.0
    %1576 = vmatprep.subr.mxu0 0.0
    %1577 = vmatpush1.msra.mxu0 0.0
    %1578 = vmatprep.subr.mxu0 0.0
    %1579 = vmatpush1.msra.mxu0 0.0
    %1580 = vmatprep.subr.mxu0 0.0
    %1581 = vmatpush1.msra.mxu0 0.0
    %1582 = vmatprep.subr.mxu0 0.0
    %1583 = vmatpush1.msra.mxu0 0.0
    %1584 = vmatprep.subr.mxu0 0.0
    %1585 = vmatpush1.msra.mxu0 0.0
    %1586 = vmatprep.subr.mxu0 0.0
    %1587 = vmatpush1.msra.mxu0 0.0
    %1588 = vmatprep.subr.mxu0 0.0
    %1589 = vmatpush1.msra.mxu0 0.0
    %1590 = vmatprep.subr.mxu0 0.0
    %1591 = vmatpush1.msra.mxu0 0.0
    %1592 = vmatprep.subr.mxu0 0.0
    %1593 = vmatpush1.msra.mxu0 0.0
    %1594 = vmatprep.subr.mxu0 0.0
    %1595 = vmatpush1.msra.mxu0 0.0
    %1596 = vmatprep.subr.mxu0 0.0
    %1597 = vmatpush1.msra.mxu0 0.0
    %1598 = vmatprep.subr.mxu0 0.0
    %1599 = vmatpush1.msra.mxu0 0.0
    %1600 = vmatprep.subr.mxu0 0.0
    %1601 = vmatpush1.msra.mxu0 0.0
    %1602 = vmatprep.subr.mxu0 0.0
    %1603 = vmatpush1.msra.mxu0 0.0
    %1604 = vmatprep.subr.mxu0 0.0
    %1605 = vmatpush1.msra.mxu0 0.0
    %1606 = vmatprep.subr.mxu0 0.0
    %1607 = vmatpush1.msra.mxu0 0.0
    %1608 = vmatprep.mubr.f32.mxu0 0.0
    %1609 = vmatmul.mubr.f32.gmra.mrb[0].mxu0 %v1459
    %v1610 = vpop.f32.mrb[0].mxu0
    %v1611 = vadd.f32 0.0, %v1610
    %v1612 = vpop.f32.mrb[0].mxu0
    %v1613 = vadd.f32 0.0, %v1612
    %1614 = vdwg.mxu0
    %v1615 = vadd.f32 %v1420, %v1540
    %v1616 = vadd.f32 %v1421, %v1542
    %v1617 = vadd.f32 %v1422, %v1611
    %v1618 = vadd.f32 %v1423, %v1613
    %1619 = vrot.lane.b32.xlu0 %v46, 111
    %v1620 = vpop.permute.xlu0 %1619
    %1621 = vrot.lane.b32.xlu0 %v49, 111
    %v1622 = vpop.permute.xlu0 %1621
    %1623 = vrot.lane.b32.xlu0 %v47, 111
    %v1624 = vpop.permute.xlu0 %1623
    %1625 = vrot.lane.b32.xlu0 %v52, 111
    %v1626 = vpop.permute.xlu0 %1625
    %vm1627 = vcmp.lt.s32.totalorder %v78, 111
    %v1628 = vsel %vm1627, %v1624, %v1626
    %v1629 = vsel %vm1627, %v1622, %v1624
    %v1630 = vsel %vm1627, %v1620, %v1622
    %v1631 = vsel %vm1627, %v1626, %v1620
    %v1632 = vlaneseq
    %v1633 = vshrl.u32 %v1632, 7
    %v1634 = vsub.s32 0, %v1633
    %v1635 = vrot.slane %v59, %v1634
    %v1636 = vlaneseq
    %v1637 = vshrl.u32 %v1636, 7
    %v1638 = vsub.s32 0, %v1637
    %v1639 = vrot.slane %v60, %v1638
    %v1640 = vlaneseq
    %v1641 = vshrl.u32 %v1640, 7
    %v1642 = vsub.s32 0, %v1641
    %v1643 = vrot.slane %v61, %v1642
    %v1644 = vlaneseq
    %v1645 = vshrl.u32 %v1644, 7
    %v1646 = vsub.s32 0, %v1645
    %v1647 = vrot.slane %v62, %v1646
    %v1648 = vmul.f32 %v1630, %v1635
    %v1649 = vmul.f32 %v1629, %v1639
    %v1650 = vmul.f32 %v1628, %v1643
    %v1651 = vmul.f32 %v1631, %v1647
    %1652 = vrot.lane.b32.xlu0 %v54, 96
    %v1653 = vpop.permute.xlu0 %1652
    %v1654 = vsel %vm104, %v1653, 0
    %v1657 = vsel %vm108, %v1648, 0
    %v1660 = vsel %vm108, %v1649, 0
    %v1663 = vsel %vm108, %v1650, 0
    %v1666 = vsel %vm108, %v1651, 0
    %1668 = vmatprep.subr.mxu0 %v1660
    %1669 = vmatpush1.msra.mxu0 %v1657
    %1670 = vmatprep.subr.mxu0 0.0
    %1671 = vmatpush1.msra.mxu0 0.0
    %1672 = vmatprep.subr.mxu0 0.0
    %1673 = vmatpush1.msra.mxu0 0.0
    %1674 = vmatprep.subr.mxu0 0.0
    %1675 = vmatpush1.msra.mxu0 0.0
    %1676 = vmatprep.subr.mxu0 0.0
    %1677 = vmatpush1.msra.mxu0 0.0
    %1678 = vmatprep.subr.mxu0 0.0
    %1679 = vmatpush1.msra.mxu0 0.0
    %1680 = vmatprep.subr.mxu0 0.0
    %1681 = vmatpush1.msra.mxu0 0.0
    %1682 = vmatprep.subr.mxu0 0.0
    %1683 = vmatpush1.msra.mxu0 0.0
    %1684 = vmatprep.subr.mxu0 0.0
    %1685 = vmatpush1.msra.mxu0 0.0
    %1686 = vmatprep.subr.mxu0 0.0
    %1687 = vmatpush1.msra.mxu0 0.0
    %1688 = vmatprep.subr.mxu0 0.0
    %1689 = vmatpush1.msra.mxu0 0.0
    %1690 = vmatprep.subr.mxu0 0.0
    %1691 = vmatpush1.msra.mxu0 0.0
    %1692 = vmatprep.subr.mxu0 0.0
    %1693 = vmatpush1.msra.mxu0 0.0
    %1694 = vmatprep.subr.mxu0 0.0
    %1695 = vmatpush1.msra.mxu0 0.0
    %1696 = vmatprep.subr.mxu0 0.0
    %1697 = vmatpush1.msra.mxu0 0.0
    %1698 = vmatprep.subr.mxu0 0.0
    %1699 = vmatpush1.msra.mxu0 0.0
    %1700 = vmatprep.subr.mxu0 0.0
    %1701 = vmatpush1.msra.mxu0 0.0
    %1702 = vmatprep.subr.mxu0 0.0
    %1703 = vmatpush1.msra.mxu0 0.0
    %1704 = vmatprep.subr.mxu0 0.0
    %1705 = vmatpush1.msra.mxu0 0.0
    %1706 = vmatprep.subr.mxu0 0.0
    %1707 = vmatpush1.msra.mxu0 0.0
    %1708 = vmatprep.subr.mxu0 0.0
    %1709 = vmatpush1.msra.mxu0 0.0
    %1710 = vmatprep.subr.mxu0 0.0
    %1711 = vmatpush1.msra.mxu0 0.0
    %1712 = vmatprep.subr.mxu0 0.0
    %1713 = vmatpush1.msra.mxu0 0.0
    %1714 = vmatprep.subr.mxu0 0.0
    %1715 = vmatpush1.msra.mxu0 0.0
    %1716 = vmatprep.subr.mxu0 0.0
    %1717 = vmatpush1.msra.mxu0 0.0
    %1718 = vmatprep.subr.mxu0 0.0
    %1719 = vmatpush1.msra.mxu0 0.0
    %1720 = vmatprep.subr.mxu0 0.0
    %1721 = vmatpush1.msra.mxu0 0.0
    %1722 = vmatprep.subr.mxu0 0.0
    %1723 = vmatpush1.msra.mxu0 0.0
    %1724 = vmatprep.subr.mxu0 0.0
    %1725 = vmatpush1.msra.mxu0 0.0
    %1726 = vmatprep.subr.mxu0 0.0
    %1727 = vmatpush1.msra.mxu0 0.0
    %1728 = vmatprep.subr.mxu0 0.0
    %1729 = vmatpush1.msra.mxu0 0.0
    %1730 = vmatprep.subr.mxu0 0.0
    %1731 = vmatpush1.msra.mxu0 0.0
    %1732 = vmatprep.mubr.f32.mxu0 0.0
    %1733 = vmatmul.mubr.f32.gmra.mrb[0].mxu0 %v1654
    %v1734 = vpop.f32.mrb[0].mxu0
    %v1735 = vadd.f32 0.0, %v1734
    %v1736 = vpop.f32.mrb[0].mxu0
    %v1737 = vadd.f32 0.0, %v1736
    %1738 = vdwg.mxu0
    %1739 = vmatprep.subr.mxu0 %v1666
    %1740 = vmatpush1.msra.mxu0 %v1663
    %1741 = vmatprep.subr.mxu0 0.0
    %1742 = vmatpush1.msra.mxu0 0.0
    %1743 = vmatprep.subr.mxu0 0.0
    %1744 = vmatpush1.msra.mxu0 0.0
    %1745 = vmatprep.subr.mxu0 0.0
    %1746 = vmatpush1.msra.mxu0 0.0
    %1747 = vmatprep.subr.mxu0 0.0
    %1748 = vmatpush1.msra.mxu0 0.0
    %1749 = vmatprep.subr.mxu0 0.0
    %1750 = vmatpush1.msra.mxu0 0.0
    %1751 = vmatprep.subr.mxu0 0.0
    %1752 = vmatpush1.msra.mxu0 0.0
    %1753 = vmatprep.subr.mxu0 0.0
    %1754 = vmatpush1.msra.mxu0 0.0
    %1755 = vmatprep.subr.mxu0 0.0
    %1756 = vmatpush1.msra.mxu0 0.0
    %1757 = vmatprep.subr.mxu0 0.0
    %1758 = vmatpush1.msra.mxu0 0.0
    %1759 = vmatprep.subr.mxu0 0.0
    %1760 = vmatpush1.msra.mxu0 0.0
    %1761 = vmatprep.subr.mxu0 0.0
    %1762 = vmatpush1.msra.mxu0 0.0
    %1763 = vmatprep.subr.mxu0 0.0
    %1764 = vmatpush1.msra.mxu0 0.0
    %1765 = vmatprep.subr.mxu0 0.0
    %1766 = vmatpush1.msra.mxu0 0.0
    %1767 = vmatprep.subr.mxu0 0.0
    %1768 = vmatpush1.msra.mxu0 0.0
    %1769 = vmatprep.subr.mxu0 0.0
    %1770 = vmatpush1.msra.mxu0 0.0
    %1771 = vmatprep.subr.mxu0 0.0
    %1772 = vmatpush1.msra.mxu0 0.0
    %1773 = vmatprep.subr.mxu0 0.0
    %1774 = vmatpush1.msra.mxu0 0.0
    %1775 = vmatprep.subr.mxu0 0.0
    %1776 = vmatpush1.msra.mxu0 0.0
    %1777 = vmatprep.subr.mxu0 0.0
    %1778 = vmatpush1.msra.mxu0 0.0
    %1779 = vmatprep.subr.mxu0 0.0
    %1780 = vmatpush1.msra.mxu0 0.0
    %1781 = vmatprep.subr.mxu0 0.0
    %1782 = vmatpush1.msra.mxu0 0.0
    %1783 = vmatprep.subr.mxu0 0.0
    %1784 = vmatpush1.msra.mxu0 0.0
    %1785 = vmatprep.subr.mxu0 0.0
    %1786 = vmatpush1.msra.mxu0 0.0
    %1787 = vmatprep.subr.mxu0 0.0
    %1788 = vmatpush1.msra.mxu0 0.0
    %1789 = vmatprep.subr.mxu0 0.0
    %1790 = vmatpush1.msra.mxu0 0.0
    %1791 = vmatprep.subr.mxu0 0.0
    %1792 = vmatpush1.msra.mxu0 0.0
    %1793 = vmatprep.subr.mxu0 0.0
    %1794 = vmatpush1.msra.mxu0 0.0
    %1795 = vmatprep.subr.mxu0 0.0
    %1796 = vmatpush1.msra.mxu0 0.0
    %1797 = vmatprep.subr.mxu0 0.0
    %1798 = vmatpush1.msra.mxu0 0.0
    %1799 = vmatprep.subr.mxu0 0.0
    %1800 = vmatpush1.msra.mxu0 0.0
    %1801 = vmatprep.subr.mxu0 0.0
    %1802 = vmatpush1.msra.mxu0 0.0
    %1803 = vmatprep.mubr.f32.mxu0 0.0
    %1804 = vmatmul.mubr.f32.gmra.mrb[0].mxu0 %v1654
    %v1805 = vpop.f32.mrb[0].mxu0
    %v1806 = vadd.f32 0.0, %v1805
    %v1807 = vpop.f32.mrb[0].mxu0
    %v1808 = vadd.f32 0.0, %v1807
    %1809 = vdwg.mxu0
    %v1810 = vadd.f32 %v1615, %v1735
    %v1811 = vadd.f32 %v1616, %v1737
    %v1812 = vadd.f32 %v1617, %v1806
    %v1813 = vadd.f32 %v1618, %v1808
    %vm1814 = vcmp.ge.f32.partialorder %v1810, 0.0
    %vm1815 = vcmp.ge.f32.partialorder %v1811, 0.0
    %vm1816 = vcmp.ge.f32.partialorder %v1812, 0.0
    %vm1817 = vcmp.ge.f32.partialorder %v1813, 0.0
    %v1818 = vmul.f32 %v1810, 0.2
    %v1819 = vmul.f32 %v1811, 0.2
    %v1820 = vmul.f32 %v1812, 0.2
    %v1821 = vmul.f32 %v1813, 0.2
    %v1822 = vsel %vm1814, %v1810, %v1818
    %v1823 = vsel %vm1815, %v1811, %v1819
    %v1824 = vsel %vm1816, %v1812, %v1820
    %v1825 = vsel %vm1817, %v1813, %v1821
    %1826 = vst [vmem:[#allocation7] sm:$0xff] %v1822
    %1827 = vst [vmem:[#allocation7 + $0x8] sm:$0xff] %v1823
    %s1828 = scalar_lea.vmem [#allocation7], 16
    %1829 = vst [vmem:[%s1828] sm:$0xff] %v1824
    %1830 = vst [vmem:[%s1828 + $0x8] sm:$0xff] %v1825
    // Predicated region
    $region26: #{tpu_custom_call.1} parent=1 // pred_check
      _
    $region27: #{tpu_custom_call.1} parent=1 // pred_check_branch
      %1832 = sbr.rel (0) target = $region29
    $region28: #{tpu_custom_call.1} parent=1 // pred_region
      %s1834 = ssub.s32 512, 512
      %1835 = vsyncadd [#allocation4], %s1834
      %s1836 = sshll.u32 [#allocation7], 4
      %s1837 = int_to_ptr.vmem [resolvable:$true] %s1836
      %1842 = dma.vmem_to_hbm [thread:$0]  %s1837, 512, %s4, [#allocation4], 256, 256, 16
    $region29: #{tpu_custom_call.1} parent=1 // pred_fallthru
      _
    // Predicated region
    $region30: #{tpu_custom_call.1} parent=1 // pred_check
      _
    $region31: #{tpu_custom_call.1} parent=1 // pred_check_branch
      %1844 = sbr.rel (0) target = $region33
    $region32: #{tpu_custom_call.1} parent=1 // pred_region
      %1845 = dma.done [#allocation4], 512
    $region33: #{tpu_custom_call.1} parent=1 // pred_fallthru
      _
    %1846 = vsyncpa [#allocation3], 1
    %1847 = vsyncpa [#allocation6], 1
    %1848 = vsyncpa [#allocation4], 1

</llo_original>
